<compile_context>
chip_gen: v6e
topology: v6e:2x2x1
jax: 0.10.0
libtpu: 0.0.40
codegen_flags: <defaults>
</compile_context>

<pallas_src>
import functools

import jax
import jax.numpy as jnp
from jax import lax
from jax.experimental import pallas as pl
from jax.experimental.pallas import tpu as pltpu

# ---------------------------------------------------------------------------
# Packing geometry.
# ---------------------------------------------------------------------------
FEATS = 40            # hidden width of the MLP
GROUP_ROWS = 48       # 40 features + 1 folded-bias ones-row + 7 pad rows (8-aligned)
GROUPS = 5            # batch elems per MXU column: 5 * 48 = 240 <= 256 (v6e/v7x MXU)
PACKED = GROUPS * GROUP_ROWS          # 240
LANE_CHUNK = 512      # lanes (batch columns) processed per inner-loop step


def _mlp_kernel(x_ref, vec_ref, w2_ref, o_ref, h1_buf, *, n_chunks):
    """One grid block: x_ref (GROUPS, block_cols) -> o_ref (GROUPS, block_cols).

    vec_ref : (48, 3)  f32   columns = [w1 | b1 (row40 = 1) | w3 (row40 = b3)]
    w2_ref  : (240, 240) bf16 block-diagonal packing of the augmented 48x48 w2
    h1_buf  : (240, LANE_CHUNK) bf16 VMEM scratch for the packed layer-1 output
    """
    w1c = vec_ref[:, 0:1]          # (48, 1)
    b1c = vec_ref[:, 1:2]          # (48, 1)
    w3c = vec_ref[:, 2:3]          # (48, 1)
    w2bd = w2_ref[...]             # (240, 240) bf16, VMEM-resident

    def chunk_body(c, carry):
        col = pl.multiple_of(c * LANE_CHUNK, LANE_CHUNK)
        xb = x_ref[:, pl.ds(col, LANE_CHUNK)]                     # (GROUPS, C) f32

        # Layer 1 (fan-in 1): VPU broadcast outer product, written directly in
        # the packed (GROUPS*48, C) layout.  Row 40 of every group is the
        # folded-bias ones-row (relu(0*x + 1) = 1); rows 41..47 are zero pad.
        for g in range(GROUPS):
            xg = xb[g:g + 1, :]                                   # (1, C)
            h1g = jnp.maximum(w1c * xg + b1c, 0.0)                # (48, C) f32 exact
            h1_buf[g * GROUP_ROWS:(g + 1) * GROUP_ROWS, :] = h1g.astype(jnp.bfloat16)

        # Layer 2: one block-diagonal MXU matmul for all 5 groups; b2 (bias
        # column) and the ones-row are folded into w2, accumulation in f32.
        h2p = jnp.dot(w2bd, h1_buf[...], preferred_element_type=jnp.float32)
        h2p = jnp.maximum(h2p, 0.0)                               # (240, C) f32

        # Layer 3 (fan-out 1): per-group weighted sublane reduce (XLU); row 40
        # of w3c carries b3, which multiplies the relu(1) = 1 row of h2.
        for g in range(GROUPS):
            h2g = h2p[g * GROUP_ROWS:(g + 1) * GROUP_ROWS, :]     # (48, C)
            yg = jnp.sum(w3c * h2g, axis=0, keepdims=True)        # (1, C) f32
            o_ref[g:g + 1, pl.ds(col, LANE_CHUNK)] = yg
        return carry

    lax.fori_loop(0, n_chunks, chunk_body, 0,
                  unroll=True if n_chunks <= 4 else 2)


def _round_up(n, m):
    return ((n + m - 1) // m) * m


def _pack_params(params):
    """Fold biases and pack the PyTorch-layout weights into kernel operands."""
    w1 = params["w1"].reshape(FEATS).astype(jnp.float32)
    b1 = params["b1"].reshape(FEATS).astype(jnp.float32)
    w2 = params["w2"].reshape(FEATS, FEATS).astype(jnp.float32)
    b2 = params["b2"].reshape(FEATS).astype(jnp.float32)
    w3 = params["w3"].reshape(FEATS).astype(jnp.float32)
    b3 = params["b3"].reshape(()).astype(jnp.float32)

    R = GROUP_ROWS
    w1a = jnp.zeros((R,), jnp.float32).at[:FEATS].set(w1)
    b1a = jnp.zeros((R,), jnp.float32).at[:FEATS].set(b1).at[FEATS].set(1.0)
    w3a = jnp.zeros((R,), jnp.float32).at[:FEATS].set(w3).at[FEATS].set(b3)
    vecs = jnp.stack([w1a, b1a, w3a], axis=1)                     # (48, 3) f32

    w2a = jnp.zeros((R, R), jnp.float32)
    w2a = w2a.at[:FEATS, :FEATS].set(w2)
    w2a = w2a.at[:FEATS, FEATS].set(b2)       # bias column (hits h1's ones-row)
    w2a = w2a.at[FEATS, FEATS].set(1.0)       # propagates the ones-row to h2
    w2_bd = jnp.kron(jnp.eye(GROUPS, dtype=jnp.float32), w2a)     # (240, 240)
    return vecs, w2_bd.astype(jnp.bfloat16)


@functools.partial(jax.jit, static_argnames=("max_block_cols",))
def sine_model_forward(x, params, *, max_block_cols=16384):
    """x: (B, 1) float32, params in PyTorch layout.  Returns (B, 1) float32."""
    B = x.shape[0]
    x_flat = x.reshape(-1).astype(jnp.float32)

    vecs, w2_bd = _pack_params(params)

    # Lane-dense batch layout: GROUPS contiguous batch slabs stacked on the
    # sublane axis, columns on the lane axis.
    cols = pl.cdiv(B, GROUPS)
    block_cols = min(max_block_cols, _round_up(cols, LANE_CHUNK))
    cols_p = _round_up(cols, block_cols)
    n_chunks = block_cols // LANE_CHUNK
    # NOTE: for production, feed pre-padded/blocked batches so this pad and the
    # final slice don't add a wrapper-side HBM round trip of x / y.
    x2d = (jnp.zeros((GROUPS * cols_p,), jnp.float32)
           .at[:B].set(x_flat)
           .reshape(GROUPS, cols_p))

    batch_spec = pl.BlockSpec((GROUPS, block_cols), lambda i: (0, i))

    y2d = pl.pallas_call(
        functools.partial(_mlp_kernel, n_chunks=n_chunks),
        out_shape=jax.ShapeDtypeStruct((GROUPS, cols_p), jnp.float32),
        grid=(cols_p // block_cols,),
        in_specs=[
            batch_spec,                                           # x (GROUPS, cols_p)
            pl.BlockSpec((GROUP_ROWS, 3), lambda i: (0, 0)),      # vecs
            pl.BlockSpec((PACKED, PACKED), lambda i: (0, 0)),     # w2_bd
        ],
        out_specs=batch_spec,
        scratch_shapes=[pltpu.VMEM((PACKED, LANE_CHUNK), jnp.bfloat16)],
        compiler_params=pltpu.CompilerParams(
            # Batch axis is fully independent; "parallel" lets the runtime
            # shard it across TensorCores where available (v7x megacore).
            dimension_semantics=("parallel",),
        ),
    )(x2d, vecs, w2_bd)

    return y2d.reshape(-1)[:B].reshape(B, 1)


def init_params(key):
    """nn.Linear-style init (uniform +-1/sqrt(fan_in)), PyTorch layout."""
    def linear(k, fan_in, fan_out):
        kw, kb = jax.random.split(k)
        bound = 1.0 / jnp.sqrt(jnp.asarray(fan_in, jnp.float32))
        w = jax.random.uniform(kw, (fan_out, fan_in), jnp.float32, -bound, bound)
        b = jax.random.uniform(kb, (fan_out,), jnp.float32, -bound, bound)
        return w, b

    k1, k2, k3 = jax.random.split(key, 3)
    w1, b1 = linear(k1, 1, 40)
    w2, b2 = linear(k2, 40, 40)
    w3, b3 = linear(k3, 40, 1)
    return {"w1": w1, "b1": b1, "w2": w2, "b2": b2, "w3": w3, "b3": b3}


def reference_forward(x, p):
    """Pure-JAX reference in the PyTorch (B, features) layout, exact f32."""
    hp = jax.lax.Precision.HIGHEST
    h1 = jnp.maximum(jnp.dot(x, p["w1"].T, precision=hp) + p["b1"], 0.0)
    h2 = jnp.maximum(jnp.dot(h1, p["w2"].T, precision=hp) + p["b2"], 0.0)
    return jnp.dot(h2, p["w3"].T, precision=hp) + p["b3"]


if __name__ == "__main__":
    key = jax.random.PRNGKey(0)
    kx, kp = jax.random.split(key)
    params = init_params(kp)

    # Small batch consistent with the module (scalar-in, scalar-out regression).
    B = 8
    x = jax.random.uniform(kx, (B, 1), jnp.float32, -5.0, 5.0)

    out = sine_model_forward(x, params)
    out = jax.block_until_ready(out)

    ref = reference_forward(x, params)
    assert out.shape == (B, 1)
    # The 40x40 layer feeds the MXU with bf16 operands (standard TPU handling
    # of f32 matmuls at default precision); layers 1 and 3 are exact f32 VPU
    # ops.  Compare against the exact-f32 reference with an intentionally
    # loosened tolerance (per the review) rather than paying ~3-6x MXU passes
    # for precision=HIGHEST.
    assert jnp.allclose(out, ref, atol=5e-2, rtol=5e-2), "mismatch vs JAX reference"
    print("KERNEL_OK")
</pallas_src>

<mosaic_0001>
module attributes {stable_mosaic.version = 11 : i64} {
  func.func @_mlp_kernel(%arg0: i32, %arg1: memref<5x512xf32, #tpu.memory_space<vmem>>, %arg2: memref<48x3xf32, #tpu.memory_space<vmem>>, %arg3: memref<240x240xbf16, #tpu.memory_space<vmem>>, %arg4: memref<5x512xf32, #tpu.memory_space<vmem>>, %arg5: memref<240x512xbf16, #tpu.memory_space<vmem>>) attributes {dimension_semantics = [#tpu.dimension_semantics<parallel>], iteration_bounds = array<i64: 1>, scalar_prefetch = 0 : i64, scratch_operands = 1 : i64, tpu.core_type = #tpu.core_type<tc>, window_params = [{transform_indices = @transform_0, window_bounds = array<i64: 5, 512>}, {pipeline_mode = #tpu.pipeline_mode<synchronous>, transform_indices = @transform_1, window_bounds = array<i64: 48, 3>}, {pipeline_mode = #tpu.pipeline_mode<synchronous>, transform_indices = @transform_2, window_bounds = array<i64: 240, 240>}, {transform_indices = @transform_3, window_bounds = array<i64: 5, 512>}]} {
    %c0 = arith.constant 0 : index
    %c0_0 = arith.constant 0 : index
    %0 = vector.load %arg2[%c0, %c0_0] : memref<48x3xf32, #tpu.memory_space<vmem>>, vector<48x1xf32>
    %c0_1 = arith.constant 0 : index
    %c1 = arith.constant 1 : index
    %1 = vector.load %arg2[%c0_1, %c1] : memref<48x3xf32, #tpu.memory_space<vmem>>, vector<48x1xf32>
    %c0_2 = arith.constant 0 : index
    %c2 = arith.constant 2 : index
    %2 = vector.load %arg2[%c0_2, %c2] : memref<48x3xf32, #tpu.memory_space<vmem>>, vector<48x1xf32>
    %c0_3 = arith.constant 0 : index
    %c0_4 = arith.constant 0 : index
    %3 = vector.load %arg3[%c0_3, %c0_4] : memref<240x240xbf16, #tpu.memory_space<vmem>>, vector<240x240xbf16>
    %c0_i32 = arith.constant 0 : i32
    %c512_i32 = arith.constant 512 : i32
    %4 = arith.muli %c0_i32, %c512_i32 : i32
    %5 = tpu.assume_multiple %4, 512 : i32
    %c0_5 = arith.constant 0 : index
    %6 = arith.index_cast %5 : i32 to index
    %7 = vector.load %arg1[%c0_5, %6] : memref<5x512xf32, #tpu.memory_space<vmem>>, vector<5x512xf32>
    %8 = vector.extract_strided_slice %7 {offsets = [0, 0], sizes = [1, 512], strides = [1, 1]} : vector<5x512xf32> to vector<1x512xf32>
    %9 = vector.broadcast %0 : vector<48x1xf32> to vector<48x512xf32>
    %10 = vector.broadcast %8 : vector<1x512xf32> to vector<48x512xf32>
    %11 = arith.mulf %9, %10 : vector<48x512xf32>
    %12 = vector.broadcast %1 : vector<48x1xf32> to vector<48x512xf32>
    %13 = arith.addf %11, %12 : vector<48x512xf32>
    %cst = arith.constant 0.000000e+00 : f32
    %14 = vector.broadcast %cst : f32 to vector<48x512xf32>
    %15 = arith.maximumf %13, %14 : vector<48x512xf32>
    %16 = arith.truncf %15 : vector<48x512xf32> to vector<48x512xbf16>
    %c0_6 = arith.constant 0 : index
    %c0_7 = arith.constant 0 : index
    %17 = vector.load %arg5[%c0_6, %c0_7] : memref<240x512xbf16, #tpu.memory_space<vmem>>, vector<48x512xbf16>
    tpu.vector_store %arg5[%c0_6, %c0_7], %16 {strides = array<i32>} : memref<240x512xbf16, #tpu.memory_space<vmem>>, vector<48x512xbf16>,
    %18 = vector.extract_strided_slice %7 {offsets = [1, 0], sizes = [1, 512], strides = [1, 1]} : vector<5x512xf32> to vector<1x512xf32>
    %19 = vector.broadcast %0 : vector<48x1xf32> to vector<48x512xf32>
    %20 = vector.broadcast %18 : vector<1x512xf32> to vector<48x512xf32>
    %21 = arith.mulf %19, %20 : vector<48x512xf32>
    %22 = vector.broadcast %1 : vector<48x1xf32> to vector<48x512xf32>
    %23 = arith.addf %21, %22 : vector<48x512xf32>
    %cst_8 = arith.constant 0.000000e+00 : f32
    %24 = vector.broadcast %cst_8 : f32 to vector<48x512xf32>
    %25 = arith.maximumf %23, %24 : vector<48x512xf32>
    %26 = arith.truncf %25 : vector<48x512xf32> to vector<48x512xbf16>
    %c48 = arith.constant 48 : index
    %c0_9 = arith.constant 0 : index
    %27 = vector.load %arg5[%c48, %c0_9] : memref<240x512xbf16, #tpu.memory_space<vmem>>, vector<48x512xbf16>
    tpu.vector_store %arg5[%c48, %c0_9], %26 {strides = array<i32>} : memref<240x512xbf16, #tpu.memory_space<vmem>>, vector<48x512xbf16>,
    %28 = vector.extract_strided_slice %7 {offsets = [2, 0], sizes = [1, 512], strides = [1, 1]} : vector<5x512xf32> to vector<1x512xf32>
    %29 = vector.broadcast %0 : vector<48x1xf32> to vector<48x512xf32>
    %30 = vector.broadcast %28 : vector<1x512xf32> to vector<48x512xf32>
    %31 = arith.mulf %29, %30 : vector<48x512xf32>
    %32 = vector.broadcast %1 : vector<48x1xf32> to vector<48x512xf32>
    %33 = arith.addf %31, %32 : vector<48x512xf32>
    %cst_10 = arith.constant 0.000000e+00 : f32
    %34 = vector.broadcast %cst_10 : f32 to vector<48x512xf32>
    %35 = arith.maximumf %33, %34 : vector<48x512xf32>
    %36 = arith.truncf %35 : vector<48x512xf32> to vector<48x512xbf16>
    %c96 = arith.constant 96 : index
    %c0_11 = arith.constant 0 : index
    %37 = vector.load %arg5[%c96, %c0_11] : memref<240x512xbf16, #tpu.memory_space<vmem>>, vector<48x512xbf16>
    tpu.vector_store %arg5[%c96, %c0_11], %36 {strides = array<i32>} : memref<240x512xbf16, #tpu.memory_space<vmem>>, vector<48x512xbf16>,
    %38 = vector.extract_strided_slice %7 {offsets = [3, 0], sizes = [1, 512], strides = [1, 1]} : vector<5x512xf32> to vector<1x512xf32>
    %39 = vector.broadcast %0 : vector<48x1xf32> to vector<48x512xf32>
    %40 = vector.broadcast %38 : vector<1x512xf32> to vector<48x512xf32>
    %41 = arith.mulf %39, %40 : vector<48x512xf32>
    %42 = vector.broadcast %1 : vector<48x1xf32> to vector<48x512xf32>
    %43 = arith.addf %41, %42 : vector<48x512xf32>
    %cst_12 = arith.constant 0.000000e+00 : f32
    %44 = vector.broadcast %cst_12 : f32 to vector<48x512xf32>
    %45 = arith.maximumf %43, %44 : vector<48x512xf32>
    %46 = arith.truncf %45 : vector<48x512xf32> to vector<48x512xbf16>
    %c144 = arith.constant 144 : index
    %c0_13 = arith.constant 0 : index
    %47 = vector.load %arg5[%c144, %c0_13] : memref<240x512xbf16, #tpu.memory_space<vmem>>, vector<48x512xbf16>
    tpu.vector_store %arg5[%c144, %c0_13], %46 {strides = array<i32>} : memref<240x512xbf16, #tpu.memory_space<vmem>>, vector<48x512xbf16>,
    %48 = vector.extract_strided_slice %7 {offsets = [4, 0], sizes = [1, 512], strides = [1, 1]} : vector<5x512xf32> to vector<1x512xf32>
    %49 = vector.broadcast %0 : vector<48x1xf32> to vector<48x512xf32>
    %50 = vector.broadcast %48 : vector<1x512xf32> to vector<48x512xf32>
    %51 = arith.mulf %49, %50 : vector<48x512xf32>
    %52 = vector.broadcast %1 : vector<48x1xf32> to vector<48x512xf32>
    %53 = arith.addf %51, %52 : vector<48x512xf32>
    %cst_14 = arith.constant 0.000000e+00 : f32
    %54 = vector.broadcast %cst_14 : f32 to vector<48x512xf32>
    %55 = arith.maximumf %53, %54 : vector<48x512xf32>
    %56 = arith.truncf %55 : vector<48x512xf32> to vector<48x512xbf16>
    %c192 = arith.constant 192 : index
    %c0_15 = arith.constant 0 : index
    %57 = vector.load %arg5[%c192, %c0_15] : memref<240x512xbf16, #tpu.memory_space<vmem>>, vector<48x512xbf16>
    tpu.vector_store %arg5[%c192, %c0_15], %56 {strides = array<i32>} : memref<240x512xbf16, #tpu.memory_space<vmem>>, vector<48x512xbf16>,
    %c0_16 = arith.constant 0 : index
    %c0_17 = arith.constant 0 : index
    %58 = vector.load %arg5[%c0_16, %c0_17] : memref<240x512xbf16, #tpu.memory_space<vmem>>, vector<240x512xbf16>
    %cst_18 = arith.constant dense<0.000000e+00> : vector<240x512xf32>
    %59 = tpu.matmul %3, %58, %cst_18 {dimension_numbers = #tpu.dot_dimension_numbers<[1], [0], [0], [1], [0, 0, 1, 1], [], []>} : vector<240x240xbf16>, vector<240x512xbf16>, vector<240x512xf32> -> vector<240x512xf32>
    %cst_19 = arith.constant 0.000000e+00 : f32
    %60 = vector.broadcast %cst_19 : f32 to vector<240x512xf32>
    %61 = arith.maximumf %59, %60 : vector<240x512xf32>
    %62 = vector.extract_strided_slice %61 {offsets = [0, 0], sizes = [48, 512], strides = [1, 1]} : vector<240x512xf32> to vector<48x512xf32>
    %63 = vector.broadcast %2 : vector<48x1xf32> to vector<48x512xf32>
    %64 = arith.mulf %63, %62 : vector<48x512xf32>
    %cst_20 = arith.constant dense<0.000000e+00> : vector<512xf32>
    %65 = vector.multi_reduction <add>, %64, %cst_20 [0] : vector<48x512xf32> to vector<512xf32>
    %66 = vector.shape_cast %65 : vector<512xf32> to vector<1x512xf32>
    %c0_21 = arith.constant 0 : index
    %67 = arith.index_cast %5 : i32 to index
    %68 = vector.load %arg4[%c0_21, %67] : memref<5x512xf32, #tpu.memory_space<vmem>>, vector<1x512xf32>
    tpu.vector_store %arg4[%c0_21, %67], %66 {strides = array<i32>} : memref<5x512xf32, #tpu.memory_space<vmem>>, vector<1x512xf32>,
    %69 = vector.extract_strided_slice %61 {offsets = [48, 0], sizes = [48, 512], strides = [1, 1]} : vector<240x512xf32> to vector<48x512xf32>
    %70 = vector.broadcast %2 : vector<48x1xf32> to vector<48x512xf32>
    %71 = arith.mulf %70, %69 : vector<48x512xf32>
    %cst_22 = arith.constant dense<0.000000e+00> : vector<512xf32>
    %72 = vector.multi_reduction <add>, %71, %cst_22 [0] : vector<48x512xf32> to vector<512xf32>
    %73 = vector.shape_cast %72 : vector<512xf32> to vector<1x512xf32>
    %c1_23 = arith.constant 1 : index
    %74 = arith.index_cast %5 : i32 to index
    %75 = vector.load %arg4[%c1_23, %74] : memref<5x512xf32, #tpu.memory_space<vmem>>, vector<1x512xf32>
    tpu.vector_store %arg4[%c1_23, %74], %73 {strides = array<i32>} : memref<5x512xf32, #tpu.memory_space<vmem>>, vector<1x512xf32>,
    %76 = vector.extract_strided_slice %61 {offsets = [96, 0], sizes = [48, 512], strides = [1, 1]} : vector<240x512xf32> to vector<48x512xf32>
    %77 = vector.broadcast %2 : vector<48x1xf32> to vector<48x512xf32>
    %78 = arith.mulf %77, %76 : vector<48x512xf32>
    %cst_24 = arith.constant dense<0.000000e+00> : vector<512xf32>
    %79 = vector.multi_reduction <add>, %78, %cst_24 [0] : vector<48x512xf32> to vector<512xf32>
    %80 = vector.shape_cast %79 : vector<512xf32> to vector<1x512xf32>
    %c2_25 = arith.constant 2 : index
    %81 = arith.index_cast %5 : i32 to index
    %82 = vector.load %arg4[%c2_25, %81] : memref<5x512xf32, #tpu.memory_space<vmem>>, vector<1x512xf32>
    tpu.vector_store %arg4[%c2_25, %81], %80 {strides = array<i32>} : memref<5x512xf32, #tpu.memory_space<vmem>>, vector<1x512xf32>,
    %83 = vector.extract_strided_slice %61 {offsets = [144, 0], sizes = [48, 512], strides = [1, 1]} : vector<240x512xf32> to vector<48x512xf32>
    %84 = vector.broadcast %2 : vector<48x1xf32> to vector<48x512xf32>
    %85 = arith.mulf %84, %83 : vector<48x512xf32>
    %cst_26 = arith.constant dense<0.000000e+00> : vector<512xf32>
    %86 = vector.multi_reduction <add>, %85, %cst_26 [0] : vector<48x512xf32> to vector<512xf32>
    %87 = vector.shape_cast %86 : vector<512xf32> to vector<1x512xf32>
    %c3 = arith.constant 3 : index
    %88 = arith.index_cast %5 : i32 to index
    %89 = vector.load %arg4[%c3, %88] : memref<5x512xf32, #tpu.memory_space<vmem>>, vector<1x512xf32>
    tpu.vector_store %arg4[%c3, %88], %87 {strides = array<i32>} : memref<5x512xf32, #tpu.memory_space<vmem>>, vector<1x512xf32>,
    %90 = vector.extract_strided_slice %61 {offsets = [192, 0], sizes = [48, 512], strides = [1, 1]} : vector<240x512xf32> to vector<48x512xf32>
    %91 = vector.broadcast %2 : vector<48x1xf32> to vector<48x512xf32>
    %92 = arith.mulf %91, %90 : vector<48x512xf32>
    %cst_27 = arith.constant dense<0.000000e+00> : vector<512xf32>
    %93 = vector.multi_reduction <add>, %92, %cst_27 [0] : vector<48x512xf32> to vector<512xf32>
    %94 = vector.shape_cast %93 : vector<512xf32> to vector<1x512xf32>
    %c4 = arith.constant 4 : index
    %95 = arith.index_cast %5 : i32 to index
    %96 = vector.load %arg4[%c4, %95] : memref<5x512xf32, #tpu.memory_space<vmem>>, vector<1x512xf32>
    tpu.vector_store %arg4[%c4, %95], %94 {strides = array<i32>} : memref<5x512xf32, #tpu.memory_space<vmem>>, vector<1x512xf32>,
    %c1_i32 = arith.constant 1 : i32
    return
  }
  func.func @transform_0(%arg0: i32) -> (i32, i32) {
    %c0_i32 = arith.constant 0 : i32
    %c0_i32_0 = arith.constant 0 : i32
    return %c0_i32, %arg0 : i32, i32
  }
  func.func @transform_1(%arg0: i32) -> (i32, i32) {
    %c0_i32 = arith.constant 0 : i32
    %c0_i32_0 = arith.constant 0 : i32
    %c0_i32_1 = arith.constant 0 : i32
    return %c0_i32, %c0_i32_0 : i32, i32
  }
  func.func @transform_2(%arg0: i32) -> (i32, i32) {
    %c0_i32 = arith.constant 0 : i32
    %c0_i32_0 = arith.constant 0 : i32
    %c0_i32_1 = arith.constant 0 : i32
    return %c0_i32, %c0_i32_0 : i32, i32
  }
  func.func @transform_3(%arg0: i32) -> (i32, i32) {
    %c0_i32 = arith.constant 0 : i32
    %c0_i32_0 = arith.constant 0 : i32
    return %c0_i32, %arg0 : i32, i32
  }
}

</mosaic_0001>

<llo_original>
// kernel: sine_model_forward.1
$region0: #{sine_model_forward.1}
  #allocation0 [shape = 'u32[]', space=smem, size = 0x4, offset = 0x4, fixed_abs, tag = 'smem constant byte address 0x4 - core index']
  #allocation1 [shape = 'u32[144,128]{1,0:T(1,128)}', space=vmem, size = 0x12000, scoped, tag = 'internal scratch']
  #allocation2 [shape = 'bf16[240,512]{1,0:T(8,128)(2,1)}', space=vmem, size = 0x3c000, scoped, tag = 'scratch operand']
  %s0 = inlined_call_operand.vmem [shape: f32[5,512], index: 0, kind: input, shape index: {}]
  %s1 = inlined_call_operand.vmem [shape: f32[48,3], index: 1, kind: input, shape index: {}]
  %s2 = inlined_call_operand.vmem [shape: bf16[240,240], index: 2, kind: input, shape index: {}]
  %s3 = inlined_call_operand.vmem [shape: f32[5,512], index: 3, kind: output, shape index: {}]
  %s4 = sld [smem:[#allocation0]]
  $region22: #{sine_model_forward.1} parent=0
    _
  %s6 = ssub.s32 1, %s4
  %s7 = scalar_select 0, %s6, %s4
  // Predicated region
  $region2: #{sine_model_forward.1} parent=0 // pred_check
    _
  $region3: #{sine_model_forward.1} parent=0 // pred_check_branch
    %9 = sbr.rel (0) target = $region5
  $region4: #{sine_model_forward.1} parent=0 // pred_region
    _
  $region5: #{sine_model_forward.1} parent=0 // pred_fallthru
    _
  // Predicated region
  $region6: #{sine_model_forward.1} parent=0 // pred_check
    _
  $region7: #{sine_model_forward.1} parent=0 // pred_check_branch
    %11 = sbr.rel (0) target = $region9
  $region8: #{sine_model_forward.1} parent=0 // pred_region
    _
  $region9: #{sine_model_forward.1} parent=0 // pred_fallthru
    _
  // Predicated region
  $region10: #{sine_model_forward.1} parent=0 // pred_check
    _
  $region11: #{sine_model_forward.1} parent=0 // pred_check_branch
    %13 = sbr.rel (0) target = $region13
  $region12: #{sine_model_forward.1} parent=0 // pred_region
    _
  $region13: #{sine_model_forward.1} parent=0 // pred_fallthru
    _
  %v15 = vld [vmem:[%s1] sm:$0xff]
  %v16 = vld [vmem:[%s1 + $0x8] sm:$0xff]
  %v17 = vld [vmem:[%s1 + $0x10] sm:$0xff]
  %v18 = vld [vmem:[%s1 + $0x18] sm:$0xff]
  %v19 = vld [vmem:[%s1 + $0x20] sm:$0xff]
  %v20 = vld [vmem:[%s1 + $0x28] sm:$0xff]
  %v21 = vld [vmem:[%s2] sm:$0xff]
  %v22 = vld [vmem:[%s2 + $0x8] sm:$0xff]
  %v23 = vld [vmem:[%s2 + $0x10] sm:$0xff]
  %v24 = vld [vmem:[%s2 + $0x18] sm:$0xff]
  %v25 = vld [vmem:[%s2 + $0x20] sm:$0xff]
  %v26 = vld [vmem:[%s2 + $0x28] sm:$0xff]
  %v27 = vld [vmem:[%s2 + $0x30] sm:$0xff]
  %v28 = vld [vmem:[%s2 + $0x38] sm:$0xff]
  %v29 = vld [vmem:[%s2 + $0x40] sm:$0xff]
  %v30 = vld [vmem:[%s2 + $0x48] sm:$0xff]
  %v31 = vld [vmem:[%s2 + $0x50] sm:$0xff]
  %v32 = vld [vmem:[%s2 + $0x58] sm:$0xff]
  %v33 = vld [vmem:[%s2 + $0x60] sm:$0xff]
  %v34 = vld [vmem:[%s2 + $0x68] sm:$0xff]
  %v35 = vld [vmem:[%s2 + $0x70] sm:$0xff]
  %v36 = vld [vmem:[%s2 + $0x78] sm:$0xff]
  %v37 = vld [vmem:[%s2 + $0x80] sm:$0xff]
  %v38 = vld [vmem:[%s2 + $0x88] sm:$0xff]
  %v39 = vld [vmem:[%s2 + $0x90] sm:$0xff]
  %v40 = vld [vmem:[%s2 + $0x98] sm:$0xff]
  %v41 = vld [vmem:[%s2 + $0xa0] sm:$0xff]
  %v42 = vld [vmem:[%s2 + $0xa8] sm:$0xff]
  %v43 = vld [vmem:[%s2 + $0xb0] sm:$0xff]
  %v44 = vld [vmem:[%s2 + $0xb8] sm:$0xff]
  %v45 = vld [vmem:[%s2 + $0xc0] sm:$0xff]
  %v46 = vld [vmem:[%s2 + $0xc8] sm:$0xff]
  %v47 = vld [vmem:[%s2 + $0xd0] sm:$0xff]
  %v48 = vld [vmem:[%s2 + $0xd8] sm:$0xff]
  %v49 = vld [vmem:[%s2 + $0xe0] sm:$0xff]
  %v50 = vld [vmem:[%s2 + $0xe8] sm:$0xff]
  %v51 = vld [vmem:[%s0] sm:$0x1f]
  %v52 = vld [vmem:[%s0 + $0x8] sm:$0x1f]
  %v53 = vld [vmem:[%s0 + $0x10] sm:$0x1f]
  %v54 = vld [vmem:[%s0 + $0x18] sm:$0x1f]
  %56 = vset.pattern.permute.xlu0 0
  %57 = vperm.xlu0 %56, %v15
  %v58 = vpop.permute.xlu0 %57
  %61 = vset.pattern.permute.xlu0 0
  %62 = vperm.xlu0 %61, %v16
  %v63 = vpop.permute.xlu0 %62
  %66 = vset.pattern.permute.xlu0 0
  %67 = vperm.xlu0 %66, %v17
  %v68 = vpop.permute.xlu0 %67
  %71 = vset.pattern.permute.xlu0 0
  %72 = vperm.xlu0 %71, %v18
  %v73 = vpop.permute.xlu0 %72
  %76 = vset.pattern.permute.xlu0 0
  %77 = vperm.xlu0 %76, %v19
  %v78 = vpop.permute.xlu0 %77
  %81 = vset.pattern.permute.xlu0 0
  %82 = vperm.xlu0 %81, %v20
  %v83 = vpop.permute.xlu0 %82
  %v85 = vlaneseq
  %v86 = vshrl.u32 %v85, 7
  %v87 = vsub.s32 0, %v86
  %v88 = vrot.slane %v51, %v87
  %v89 = vlaneseq
  %v90 = vshrl.u32 %v89, 7
  %v91 = vsub.s32 0, %v90
  %v92 = vrot.slane %v52, %v91
  %v93 = vlaneseq
  %v94 = vshrl.u32 %v93, 7
  %v95 = vsub.s32 0, %v94
  %v96 = vrot.slane %v53, %v95
  %v97 = vlaneseq
  %v98 = vshrl.u32 %v97, 7
  %v99 = vsub.s32 0, %v98
  %v100 = vrot.slane %v54, %v99
  %v101 = vmul.f32 %v58, %v88
  %v102 = vmul.f32 %v58, %v92
  %v103 = vmul.f32 %v58, %v96
  %v104 = vmul.f32 %v58, %v100
  %v105 = vmul.f32 %v63, %v88
  %v106 = vmul.f32 %v63, %v92
  %v107 = vmul.f32 %v63, %v96
  %v108 = vmul.f32 %v63, %v100
  %v109 = vmul.f32 %v68, %v88
  %v110 = vmul.f32 %v68, %v92
  %v111 = vmul.f32 %v68, %v96
  %v112 = vmul.f32 %v68, %v100
  %v113 = vmul.f32 %v73, %v88
  %v114 = vmul.f32 %v73, %v92
  %v115 = vmul.f32 %v73, %v96
  %v116 = vmul.f32 %v73, %v100
  %v117 = vmul.f32 %v78, %v88
  %v118 = vmul.f32 %v78, %v92
  %v119 = vmul.f32 %v78, %v96
  %v120 = vmul.f32 %v78, %v100
  %v121 = vmul.f32 %v83, %v88
  %v122 = vmul.f32 %v83, %v92
  %v123 = vmul.f32 %v83, %v96
  %v124 = vmul.f32 %v83, %v100
  %125 = vset.pattern.permute.xlu0 1
  %126 = vperm.xlu0 %125, %v15
  %v127 = vpop.permute.xlu0 %126
  %129 = vset.pattern.permute.xlu0 1
  %130 = vperm.xlu0 %129, %v16
  %v131 = vpop.permute.xlu0 %130
  %133 = vset.pattern.permute.xlu0 1
  %134 = vperm.xlu0 %133, %v17
  %v135 = vpop.permute.xlu0 %134
  %137 = vset.pattern.permute.xlu0 1
  %138 = vperm.xlu0 %137, %v18
  %v139 = vpop.permute.xlu0 %138
  %141 = vset.pattern.permute.xlu0 1
  %142 = vperm.xlu0 %141, %v19
  %v143 = vpop.permute.xlu0 %142
  %145 = vset.pattern.permute.xlu0 1
  %146 = vperm.xlu0 %145, %v20
  %v147 = vpop.permute.xlu0 %146
  %v149 = vadd.f32 %v101, %v127
  %v150 = vadd.f32 %v102, %v127
  %v151 = vadd.f32 %v103, %v127
  %v152 = vadd.f32 %v104, %v127
  %v153 = vadd.f32 %v105, %v131
  %v154 = vadd.f32 %v106, %v131
  %v155 = vadd.f32 %v107, %v131
  %v156 = vadd.f32 %v108, %v131
  %v157 = vadd.f32 %v109, %v135
  %v158 = vadd.f32 %v110, %v135
  %v159 = vadd.f32 %v111, %v135
  %v160 = vadd.f32 %v112, %v135
  %v161 = vadd.f32 %v113, %v139
  %v162 = vadd.f32 %v114, %v139
  %v163 = vadd.f32 %v115, %v139
  %v164 = vadd.f32 %v116, %v139
  %v165 = vadd.f32 %v117, %v143
  %v166 = vadd.f32 %v118, %v143
  %v167 = vadd.f32 %v119, %v143
  %v168 = vadd.f32 %v120, %v143
  %v169 = vadd.f32 %v121, %v147
  %v170 = vadd.f32 %v122, %v147
  %v171 = vadd.f32 %v123, %v147
  %v172 = vadd.f32 %v124, %v147
  %v173 = vmax.f32 %v149, 0.0
  %v174 = vmax.f32 %v150, 0.0
  %v175 = vmax.f32 %v151, 0.0
  %v176 = vmax.f32 %v152, 0.0
  %v177 = vmax.f32 %v153, 0.0
  %v178 = vmax.f32 %v154, 0.0
  %v179 = vmax.f32 %v155, 0.0
  %v180 = vmax.f32 %v156, 0.0
  %v181 = vmax.f32 %v157, 0.0
  %v182 = vmax.f32 %v158, 0.0
  %v183 = vmax.f32 %v159, 0.0
  %v184 = vmax.f32 %v160, 0.0
  %v185 = vmax.f32 %v161, 0.0
  %v186 = vmax.f32 %v162, 0.0
  %v187 = vmax.f32 %v163, 0.0
  %v188 = vmax.f32 %v164, 0.0
  %v189 = vmax.f32 %v165, 0.0
  %v190 = vmax.f32 %v166, 0.0
  %v191 = vmax.f32 %v167, 0.0
  %v192 = vmax.f32 %v168, 0.0
  %v193 = vmax.f32 %v169, 0.0
  %v194 = vmax.f32 %v170, 0.0
  %v195 = vmax.f32 %v171, 0.0
  %v196 = vmax.f32 %v172, 0.0
  %v197 = vpack.c.bf16 %v177, %v173
  %v198 = vpack.c.bf16 %v178, %v174
  %v199 = vpack.c.bf16 %v179, %v175
  %v200 = vpack.c.bf16 %v180, %v176
  %v201 = vpack.c.bf16 %v185, %v181
  %v202 = vpack.c.bf16 %v186, %v182
  %v203 = vpack.c.bf16 %v187, %v183
  %v204 = vpack.c.bf16 %v188, %v184
  %v205 = vpack.c.bf16 %v193, %v189
  %v206 = vpack.c.bf16 %v194, %v190
  %v207 = vpack.c.bf16 %v195, %v191
  %v208 = vpack.c.bf16 %v196, %v192
  %v221 = vunpack.c.l.b16 %v197
  %v222 = vunpack.c.l.b16 %v198
  %v223 = vunpack.c.l.b16 %v199
  %v224 = vunpack.c.l.b16 %v200
  %v225 = vunpack.c.h.b16 %v197
  %v226 = vunpack.c.h.b16 %v198
  %v227 = vunpack.c.h.b16 %v199
  %v228 = vunpack.c.h.b16 %v200
  %v229 = vunpack.c.l.b16 %v201
  %v230 = vunpack.c.l.b16 %v202
  %v231 = vunpack.c.l.b16 %v203
  %v232 = vunpack.c.l.b16 %v204
  %v233 = vunpack.c.h.b16 %v201
  %v234 = vunpack.c.h.b16 %v202
  %v235 = vunpack.c.h.b16 %v203
  %v236 = vunpack.c.h.b16 %v204
  %v237 = vunpack.c.l.b16 %v205
  %v238 = vunpack.c.l.b16 %v206
  %v239 = vunpack.c.l.b16 %v207
  %v240 = vunpack.c.l.b16 %v208
  %v241 = vunpack.c.h.b16 %v205
  %v242 = vunpack.c.h.b16 %v206
  %v243 = vunpack.c.h.b16 %v207
  %v244 = vunpack.c.h.b16 %v208
  %v245 = vpack.c.b16 %v222, %v221
  %v246 = vpack.c.b16 %v224, %v223
  %v247 = vpack.c.b16 %v226, %v225
  %v248 = vpack.c.b16 %v228, %v227
  %v249 = vpack.c.b16 %v230, %v229
  %v250 = vpack.c.b16 %v232, %v231
  %v251 = vpack.c.b16 %v234, %v233
  %v252 = vpack.c.b16 %v236, %v235
  %v253 = vpack.c.b16 %v238, %v237
  %v254 = vpack.c.b16 %v240, %v239
  %v255 = vpack.c.b16 %v242, %v241
  %v256 = vpack.c.b16 %v244, %v243
  %269 = vst [vmem:[#allocation2] sm:$0xff] %v245
  %270 = vst [vmem:[#allocation2 + $0x8] sm:$0xff] %v246
  %271 = vst [vmem:[#allocation2 + $0x10] sm:$0xff] %v247
  %272 = vst [vmem:[#allocation2 + $0x18] sm:$0xff] %v248
  %273 = vst [vmem:[#allocation2 + $0x20] sm:$0xff] %v249
  %274 = vst [vmem:[#allocation2 + $0x28] sm:$0xff] %v250
  %275 = vst [vmem:[#allocation2 + $0x30] sm:$0xff] %v251
  %276 = vst [vmem:[#allocation2 + $0x38] sm:$0xff] %v252
  %277 = vst [vmem:[#allocation2 + $0x40] sm:$0xff] %v253
  %278 = vst [vmem:[#allocation2 + $0x48] sm:$0xff] %v254
  %279 = vst [vmem:[#allocation2 + $0x50] sm:$0xff] %v255
  %280 = vst [vmem:[#allocation2 + $0x58] sm:$0xff] %v256
  %v281 = vlaneseq
  %v282 = vshrl.u32 %v281, 7
  %v283 = vsub.s32 1, %v282
  %v284 = vrot.slane %v51, %v283
  %v285 = vlaneseq
  %v286 = vshrl.u32 %v285, 7
  %v287 = vsub.s32 1, %v286
  %v288 = vrot.slane %v52, %v287
  %v289 = vlaneseq
  %v290 = vshrl.u32 %v289, 7
  %v291 = vsub.s32 1, %v290
  %v292 = vrot.slane %v53, %v291
  %v293 = vlaneseq
  %v294 = vshrl.u32 %v293, 7
  %v295 = vsub.s32 1, %v294
  %v296 = vrot.slane %v54, %v295
  %v297 = vmul.f32 %v58, %v284
  %v298 = vmul.f32 %v58, %v288
  %v299 = vmul.f32 %v58, %v292
  %v300 = vmul.f32 %v58, %v296
  %v301 = vmul.f32 %v63, %v284
  %v302 = vmul.f32 %v63, %v288
  %v303 = vmul.f32 %v63, %v292
  %v304 = vmul.f32 %v63, %v296
  %v305 = vmul.f32 %v68, %v284
  %v306 = vmul.f32 %v68, %v288
  %v307 = vmul.f32 %v68, %v292
  %v308 = vmul.f32 %v68, %v296
  %v309 = vmul.f32 %v73, %v284
  %v310 = vmul.f32 %v73, %v288
  %v311 = vmul.f32 %v73, %v292
  %v312 = vmul.f32 %v73, %v296
  %v313 = vmul.f32 %v78, %v284
  %v314 = vmul.f32 %v78, %v288
  %v315 = vmul.f32 %v78, %v292
  %v316 = vmul.f32 %v78, %v296
  %v317 = vmul.f32 %v83, %v284
  %v318 = vmul.f32 %v83, %v288
  %v319 = vmul.f32 %v83, %v292
  %v320 = vmul.f32 %v83, %v296
  %v321 = vadd.f32 %v297, %v127
  %v322 = vadd.f32 %v298, %v127
  %v323 = vadd.f32 %v299, %v127
  %v324 = vadd.f32 %v300, %v127
  %v325 = vadd.f32 %v301, %v131
  %v326 = vadd.f32 %v302, %v131
  %v327 = vadd.f32 %v303, %v131
  %v328 = vadd.f32 %v304, %v131
  %v329 = vadd.f32 %v305, %v135
  %v330 = vadd.f32 %v306, %v135
  %v331 = vadd.f32 %v307, %v135
  %v332 = vadd.f32 %v308, %v135
  %v333 = vadd.f32 %v309, %v139
  %v334 = vadd.f32 %v310, %v139
  %v335 = vadd.f32 %v311, %v139
  %v336 = vadd.f32 %v312, %v139
  %v337 = vadd.f32 %v313, %v143
  %v338 = vadd.f32 %v314, %v143
  %v339 = vadd.f32 %v315, %v143
  %v340 = vadd.f32 %v316, %v143
  %v341 = vadd.f32 %v317, %v147
  %v342 = vadd.f32 %v318, %v147
  %v343 = vadd.f32 %v319, %v147
  %v344 = vadd.f32 %v320, %v147
  %v345 = vmax.f32 %v321, 0.0
  %v346 = vmax.f32 %v322, 0.0
  %v347 = vmax.f32 %v323, 0.0
  %v348 = vmax.f32 %v324, 0.0
  %v349 = vmax.f32 %v325, 0.0
  %v350 = vmax.f32 %v326, 0.0
  %v351 = vmax.f32 %v327, 0.0
  %v352 = vmax.f32 %v328, 0.0
  %v353 = vmax.f32 %v329, 0.0
  %v354 = vmax.f32 %v330, 0.0
  %v355 = vmax.f32 %v331, 0.0
  %v356 = vmax.f32 %v332, 0.0
  %v357 = vmax.f32 %v333, 0.0
  %v358 = vmax.f32 %v334, 0.0
  %v359 = vmax.f32 %v335, 0.0
  %v360 = vmax.f32 %v336, 0.0
  %v361 = vmax.f32 %v337, 0.0
  %v362 = vmax.f32 %v338, 0.0
  %v363 = vmax.f32 %v339, 0.0
  %v364 = vmax.f32 %v340, 0.0
  %v365 = vmax.f32 %v341, 0.0
  %v366 = vmax.f32 %v342, 0.0
  %v367 = vmax.f32 %v343, 0.0
  %v368 = vmax.f32 %v344, 0.0
  %v369 = vpack.c.bf16 %v349, %v345
  %v370 = vpack.c.bf16 %v350, %v346
  %v371 = vpack.c.bf16 %v351, %v347
  %v372 = vpack.c.bf16 %v352, %v348
  %v373 = vpack.c.bf16 %v357, %v353
  %v374 = vpack.c.bf16 %v358, %v354
  %v375 = vpack.c.bf16 %v359, %v355
  %v376 = vpack.c.bf16 %v360, %v356
  %v377 = vpack.c.bf16 %v365, %v361
  %v378 = vpack.c.bf16 %v366, %v362
  %v379 = vpack.c.bf16 %v367, %v363
  %v380 = vpack.c.bf16 %v368, %v364
  %v393 = vunpack.c.l.b16 %v369
  %v394 = vunpack.c.l.b16 %v370
  %v395 = vunpack.c.l.b16 %v371
  %v396 = vunpack.c.l.b16 %v372
  %v397 = vunpack.c.h.b16 %v369
  %v398 = vunpack.c.h.b16 %v370
  %v399 = vunpack.c.h.b16 %v371
  %v400 = vunpack.c.h.b16 %v372
  %v401 = vunpack.c.l.b16 %v373
  %v402 = vunpack.c.l.b16 %v374
  %v403 = vunpack.c.l.b16 %v375
  %v404 = vunpack.c.l.b16 %v376
  %v405 = vunpack.c.h.b16 %v373
  %v406 = vunpack.c.h.b16 %v374
  %v407 = vunpack.c.h.b16 %v375
  %v408 = vunpack.c.h.b16 %v376
  %v409 = vunpack.c.l.b16 %v377
  %v410 = vunpack.c.l.b16 %v378
  %v411 = vunpack.c.l.b16 %v379
  %v412 = vunpack.c.l.b16 %v380
  %v413 = vunpack.c.h.b16 %v377
  %v414 = vunpack.c.h.b16 %v378
  %v415 = vunpack.c.h.b16 %v379
  %v416 = vunpack.c.h.b16 %v380
  %v417 = vpack.c.b16 %v394, %v393
  %v418 = vpack.c.b16 %v396, %v395
  %v419 = vpack.c.b16 %v398, %v397
  %v420 = vpack.c.b16 %v400, %v399
  %v421 = vpack.c.b16 %v402, %v401
  %v422 = vpack.c.b16 %v404, %v403
  %v423 = vpack.c.b16 %v406, %v405
  %v424 = vpack.c.b16 %v408, %v407
  %v425 = vpack.c.b16 %v410, %v409
  %v426 = vpack.c.b16 %v412, %v411
  %v427 = vpack.c.b16 %v414, %v413
  %v428 = vpack.c.b16 %v416, %v415
  %441 = vst [vmem:[#allocation2 + $0x60] sm:$0xff] %v417
  %442 = vst [vmem:[#allocation2 + $0x68] sm:$0xff] %v418
  %443 = vst [vmem:[#allocation2 + $0x70] sm:$0xff] %v419
  %444 = vst [vmem:[#allocation2 + $0x78] sm:$0xff] %v420
  %445 = vst [vmem:[#allocation2 + $0x80] sm:$0xff] %v421
  %446 = vst [vmem:[#allocation2 + $0x88] sm:$0xff] %v422
  %447 = vst [vmem:[#allocation2 + $0x90] sm:$0xff] %v423
  %448 = vst [vmem:[#allocation2 + $0x98] sm:$0xff] %v424
  %449 = vst [vmem:[#allocation2 + $0xa0] sm:$0xff] %v425
  %450 = vst [vmem:[#allocation2 + $0xa8] sm:$0xff] %v426
  %451 = vst [vmem:[#allocation2 + $0xb0] sm:$0xff] %v427
  %452 = vst [vmem:[#allocation2 + $0xb8] sm:$0xff] %v428
  %v453 = vlaneseq
  %v454 = vshrl.u32 %v453, 7
  %v455 = vsub.s32 2, %v454
  %v456 = vrot.slane %v51, %v455
  %v457 = vlaneseq
  %v458 = vshrl.u32 %v457, 7
  %v459 = vsub.s32 2, %v458
  %v460 = vrot.slane %v52, %v459
  %v461 = vlaneseq
  %v462 = vshrl.u32 %v461, 7
  %v463 = vsub.s32 2, %v462
  %v464 = vrot.slane %v53, %v463
  %v465 = vlaneseq
  %v466 = vshrl.u32 %v465, 7
  %v467 = vsub.s32 2, %v466
  %v468 = vrot.slane %v54, %v467
  %v469 = vmul.f32 %v58, %v456
  %v470 = vmul.f32 %v58, %v460
  %v471 = vmul.f32 %v58, %v464
  %v472 = vmul.f32 %v58, %v468
  %v473 = vmul.f32 %v63, %v456
  %v474 = vmul.f32 %v63, %v460
  %v475 = vmul.f32 %v63, %v464
  %v476 = vmul.f32 %v63, %v468
  %v477 = vmul.f32 %v68, %v456
  %v478 = vmul.f32 %v68, %v460
  %v479 = vmul.f32 %v68, %v464
  %v480 = vmul.f32 %v68, %v468
  %v481 = vmul.f32 %v73, %v456
  %v482 = vmul.f32 %v73, %v460
  %v483 = vmul.f32 %v73, %v464
  %v484 = vmul.f32 %v73, %v468
  %v485 = vmul.f32 %v78, %v456
  %v486 = vmul.f32 %v78, %v460
  %v487 = vmul.f32 %v78, %v464
  %v488 = vmul.f32 %v78, %v468
  %v489 = vmul.f32 %v83, %v456
  %v490 = vmul.f32 %v83, %v460
  %v491 = vmul.f32 %v83, %v464
  %v492 = vmul.f32 %v83, %v468
  %v493 = vadd.f32 %v469, %v127
  %v494 = vadd.f32 %v470, %v127
  %v495 = vadd.f32 %v471, %v127
  %v496 = vadd.f32 %v472, %v127
  %v497 = vadd.f32 %v473, %v131
  %v498 = vadd.f32 %v474, %v131
  %v499 = vadd.f32 %v475, %v131
  %v500 = vadd.f32 %v476, %v131
  %v501 = vadd.f32 %v477, %v135
  %v502 = vadd.f32 %v478, %v135
  %v503 = vadd.f32 %v479, %v135
  %v504 = vadd.f32 %v480, %v135
  %v505 = vadd.f32 %v481, %v139
  %v506 = vadd.f32 %v482, %v139
  %v507 = vadd.f32 %v483, %v139
  %v508 = vadd.f32 %v484, %v139
  %v509 = vadd.f32 %v485, %v143
  %v510 = vadd.f32 %v486, %v143
  %v511 = vadd.f32 %v487, %v143
  %v512 = vadd.f32 %v488, %v143
  %v513 = vadd.f32 %v489, %v147
  %v514 = vadd.f32 %v490, %v147
  %v515 = vadd.f32 %v491, %v147
  %v516 = vadd.f32 %v492, %v147
  %v517 = vmax.f32 %v493, 0.0
  %v518 = vmax.f32 %v494, 0.0
  %v519 = vmax.f32 %v495, 0.0
  %v520 = vmax.f32 %v496, 0.0
  %v521 = vmax.f32 %v497, 0.0
  %v522 = vmax.f32 %v498, 0.0
  %v523 = vmax.f32 %v499, 0.0
  %v524 = vmax.f32 %v500, 0.0
  %v525 = vmax.f32 %v501, 0.0
  %v526 = vmax.f32 %v502, 0.0
  %v527 = vmax.f32 %v503, 0.0
  %v528 = vmax.f32 %v504, 0.0
  %v529 = vmax.f32 %v505, 0.0
  %v530 = vmax.f32 %v506, 0.0
  %v531 = vmax.f32 %v507, 0.0
  %v532 = vmax.f32 %v508, 0.0
  %v533 = vmax.f32 %v509, 0.0
  %v534 = vmax.f32 %v510, 0.0
  %v535 = vmax.f32 %v511, 0.0
  %v536 = vmax.f32 %v512, 0.0
  %v537 = vmax.f32 %v513, 0.0
  %v538 = vmax.f32 %v514, 0.0
  %v539 = vmax.f32 %v515, 0.0
  %v540 = vmax.f32 %v516, 0.0
  %v541 = vpack.c.bf16 %v521, %v517
  %v542 = vpack.c.bf16 %v522, %v518
  %v543 = vpack.c.bf16 %v523, %v519
  %v544 = vpack.c.bf16 %v524, %v520
  %v545 = vpack.c.bf16 %v529, %v525
  %v546 = vpack.c.bf16 %v530, %v526
  %v547 = vpack.c.bf16 %v531, %v527
  %v548 = vpack.c.bf16 %v532, %v528
  %v549 = vpack.c.bf16 %v537, %v533
  %v550 = vpack.c.bf16 %v538, %v534
  %v551 = vpack.c.bf16 %v539, %v535
  %v552 = vpack.c.bf16 %v540, %v536
  %v565 = vunpack.c.l.b16 %v541
  %v566 = vunpack.c.l.b16 %v542
  %v567 = vunpack.c.l.b16 %v543
  %v568 = vunpack.c.l.b16 %v544
  %v569 = vunpack.c.h.b16 %v541
  %v570 = vunpack.c.h.b16 %v542
  %v571 = vunpack.c.h.b16 %v543
  %v572 = vunpack.c.h.b16 %v544
  %v573 = vunpack.c.l.b16 %v545
  %v574 = vunpack.c.l.b16 %v546
  %v575 = vunpack.c.l.b16 %v547
  %v576 = vunpack.c.l.b16 %v548
  %v577 = vunpack.c.h.b16 %v545
  %v578 = vunpack.c.h.b16 %v546
  %v579 = vunpack.c.h.b16 %v547
  %v580 = vunpack.c.h.b16 %v548
  %v581 = vunpack.c.l.b16 %v549
  %v582 = vunpack.c.l.b16 %v550
  %v583 = vunpack.c.l.b16 %v551
  %v584 = vunpack.c.l.b16 %v552
  %v585 = vunpack.c.h.b16 %v549
  %v586 = vunpack.c.h.b16 %v550
  %v587 = vunpack.c.h.b16 %v551
  %v588 = vunpack.c.h.b16 %v552
  %v589 = vpack.c.b16 %v566, %v565
  %v590 = vpack.c.b16 %v568, %v567
  %v591 = vpack.c.b16 %v570, %v569
  %v592 = vpack.c.b16 %v572, %v571
  %v593 = vpack.c.b16 %v574, %v573
  %v594 = vpack.c.b16 %v576, %v575
  %v595 = vpack.c.b16 %v578, %v577
  %v596 = vpack.c.b16 %v580, %v579
  %v597 = vpack.c.b16 %v582, %v581
  %v598 = vpack.c.b16 %v584, %v583
  %v599 = vpack.c.b16 %v586, %v585
  %v600 = vpack.c.b16 %v588, %v587
  %613 = vst [vmem:[#allocation2 + $0xc0] sm:$0xff] %v589
  %614 = vst [vmem:[#allocation2 + $0xc8] sm:$0xff] %v590
  %615 = vst [vmem:[#allocation2 + $0xd0] sm:$0xff] %v591
  %616 = vst [vmem:[#allocation2 + $0xd8] sm:$0xff] %v592
  %617 = vst [vmem:[#allocation2 + $0xe0] sm:$0xff] %v593
  %618 = vst [vmem:[#allocation2 + $0xe8] sm:$0xff] %v594
  %619 = vst [vmem:[#allocation2 + $0xf0] sm:$0xff] %v595
  %620 = vst [vmem:[#allocation2 + $0xf8] sm:$0xff] %v596
  %621 = vst [vmem:[#allocation2 + $0x100] sm:$0xff] %v597
  %622 = vst [vmem:[#allocation2 + $0x108] sm:$0xff] %v598
  %623 = vst [vmem:[#allocation2 + $0x110] sm:$0xff] %v599
  %624 = vst [vmem:[#allocation2 + $0x118] sm:$0xff] %v600
  %v625 = vlaneseq
  %v626 = vshrl.u32 %v625, 7
  %v627 = vsub.s32 3, %v626
  %v628 = vrot.slane %v51, %v627
  %v629 = vlaneseq
  %v630 = vshrl.u32 %v629, 7
  %v631 = vsub.s32 3, %v630
  %v632 = vrot.slane %v52, %v631
  %v633 = vlaneseq
  %v634 = vshrl.u32 %v633, 7
  %v635 = vsub.s32 3, %v634
  %v636 = vrot.slane %v53, %v635
  %v637 = vlaneseq
  %v638 = vshrl.u32 %v637, 7
  %v639 = vsub.s32 3, %v638
  %v640 = vrot.slane %v54, %v639
  %v641 = vmul.f32 %v58, %v628
  %v642 = vmul.f32 %v58, %v632
  %v643 = vmul.f32 %v58, %v636
  %v644 = vmul.f32 %v58, %v640
  %v645 = vmul.f32 %v63, %v628
  %v646 = vmul.f32 %v63, %v632
  %v647 = vmul.f32 %v63, %v636
  %v648 = vmul.f32 %v63, %v640
  %v649 = vmul.f32 %v68, %v628
  %v650 = vmul.f32 %v68, %v632
  %v651 = vmul.f32 %v68, %v636
  %v652 = vmul.f32 %v68, %v640
  %v653 = vmul.f32 %v73, %v628
  %v654 = vmul.f32 %v73, %v632
  %v655 = vmul.f32 %v73, %v636
  %v656 = vmul.f32 %v73, %v640
  %v657 = vmul.f32 %v78, %v628
  %v658 = vmul.f32 %v78, %v632
  %v659 = vmul.f32 %v78, %v636
  %v660 = vmul.f32 %v78, %v640
  %v661 = vmul.f32 %v83, %v628
  %v662 = vmul.f32 %v83, %v632
  %v663 = vmul.f32 %v83, %v636
  %v664 = vmul.f32 %v83, %v640
  %v665 = vadd.f32 %v641, %v127
  %v666 = vadd.f32 %v642, %v127
  %v667 = vadd.f32 %v643, %v127
  %v668 = vadd.f32 %v644, %v127
  %v669 = vadd.f32 %v645, %v131
  %v670 = vadd.f32 %v646, %v131
  %v671 = vadd.f32 %v647, %v131
  %v672 = vadd.f32 %v648, %v131
  %v673 = vadd.f32 %v649, %v135
  %v674 = vadd.f32 %v650, %v135
  %v675 = vadd.f32 %v651, %v135
  %v676 = vadd.f32 %v652, %v135
  %v677 = vadd.f32 %v653, %v139
  %v678 = vadd.f32 %v654, %v139
  %v679 = vadd.f32 %v655, %v139
  %v680 = vadd.f32 %v656, %v139
  %v681 = vadd.f32 %v657, %v143
  %v682 = vadd.f32 %v658, %v143
  %v683 = vadd.f32 %v659, %v143
  %v684 = vadd.f32 %v660, %v143
  %v685 = vadd.f32 %v661, %v147
  %v686 = vadd.f32 %v662, %v147
  %v687 = vadd.f32 %v663, %v147
  %v688 = vadd.f32 %v664, %v147
  %v689 = vmax.f32 %v665, 0.0
  %v690 = vmax.f32 %v666, 0.0
  %v691 = vmax.f32 %v667, 0.0
  %v692 = vmax.f32 %v668, 0.0
  %v693 = vmax.f32 %v669, 0.0
  %v694 = vmax.f32 %v670, 0.0
  %v695 = vmax.f32 %v671, 0.0
  %v696 = vmax.f32 %v672, 0.0
  %v697 = vmax.f32 %v673, 0.0
  %v698 = vmax.f32 %v674, 0.0
  %v699 = vmax.f32 %v675, 0.0
  %v700 = vmax.f32 %v676, 0.0
  %v701 = vmax.f32 %v677, 0.0
  %v702 = vmax.f32 %v678, 0.0
  %v703 = vmax.f32 %v679, 0.0
  %v704 = vmax.f32 %v680, 0.0
  %v705 = vmax.f32 %v681, 0.0
  %v706 = vmax.f32 %v682, 0.0
  %v707 = vmax.f32 %v683, 0.0
  %v708 = vmax.f32 %v684, 0.0
  %v709 = vmax.f32 %v685, 0.0
  %v710 = vmax.f32 %v686, 0.0
  %v711 = vmax.f32 %v687, 0.0
  %v712 = vmax.f32 %v688, 0.0
  %v713 = vpack.c.bf16 %v693, %v689
  %v714 = vpack.c.bf16 %v694, %v690
  %v715 = vpack.c.bf16 %v695, %v691
  %v716 = vpack.c.bf16 %v696, %v692
  %v717 = vpack.c.bf16 %v701, %v697
  %v718 = vpack.c.bf16 %v702, %v698
  %v719 = vpack.c.bf16 %v703, %v699
  %v720 = vpack.c.bf16 %v704, %v700
  %v721 = vpack.c.bf16 %v709, %v705
  %v722 = vpack.c.bf16 %v710, %v706
  %v723 = vpack.c.bf16 %v711, %v707
  %v724 = vpack.c.bf16 %v712, %v708
  %v737 = vunpack.c.l.b16 %v713
  %v738 = vunpack.c.l.b16 %v714
  %v739 = vunpack.c.l.b16 %v715
  %v740 = vunpack.c.l.b16 %v716
  %v741 = vunpack.c.h.b16 %v713
  %v742 = vunpack.c.h.b16 %v714
  %v743 = vunpack.c.h.b16 %v715
  %v744 = vunpack.c.h.b16 %v716
  %v745 = vunpack.c.l.b16 %v717
  %v746 = vunpack.c.l.b16 %v718
  %v747 = vunpack.c.l.b16 %v719
  %v748 = vunpack.c.l.b16 %v720
  %v749 = vunpack.c.h.b16 %v717
  %v750 = vunpack.c.h.b16 %v718
  %v751 = vunpack.c.h.b16 %v719
  %v752 = vunpack.c.h.b16 %v720
  %v753 = vunpack.c.l.b16 %v721
  %v754 = vunpack.c.l.b16 %v722
  %v755 = vunpack.c.l.b16 %v723
  %v756 = vunpack.c.l.b16 %v724
  %v757 = vunpack.c.h.b16 %v721
  %v758 = vunpack.c.h.b16 %v722
  %v759 = vunpack.c.h.b16 %v723
  %v760 = vunpack.c.h.b16 %v724
  %v761 = vpack.c.b16 %v738, %v737
  %v762 = vpack.c.b16 %v740, %v739
  %v763 = vpack.c.b16 %v742, %v741
  %v764 = vpack.c.b16 %v744, %v743
  %v765 = vpack.c.b16 %v746, %v745
  %v766 = vpack.c.b16 %v748, %v747
  %v767 = vpack.c.b16 %v750, %v749
  %v768 = vpack.c.b16 %v752, %v751
  %v769 = vpack.c.b16 %v754, %v753
  %v770 = vpack.c.b16 %v756, %v755
  %v771 = vpack.c.b16 %v758, %v757
  %v772 = vpack.c.b16 %v760, %v759
  %785 = vst [vmem:[#allocation2 + $0x120] sm:$0xff] %v761
  %786 = vst [vmem:[#allocation2 + $0x128] sm:$0xff] %v762
  %787 = vst [vmem:[#allocation2 + $0x130] sm:$0xff] %v763
  %788 = vst [vmem:[#allocation2 + $0x138] sm:$0xff] %v764
  %789 = vst [vmem:[#allocation2 + $0x140] sm:$0xff] %v765
  %790 = vst [vmem:[#allocation2 + $0x148] sm:$0xff] %v766
  %791 = vst [vmem:[#allocation2 + $0x150] sm:$0xff] %v767
  %792 = vst [vmem:[#allocation2 + $0x158] sm:$0xff] %v768
  %793 = vst [vmem:[#allocation2 + $0x160] sm:$0xff] %v769
  %794 = vst [vmem:[#allocation2 + $0x168] sm:$0xff] %v770
  %795 = vst [vmem:[#allocation2 + $0x170] sm:$0xff] %v771
  %796 = vst [vmem:[#allocation2 + $0x178] sm:$0xff] %v772
  %v797 = vlaneseq
  %v798 = vshrl.u32 %v797, 7
  %v799 = vsub.s32 4, %v798
  %v800 = vrot.slane %v51, %v799
  %v801 = vlaneseq
  %v802 = vshrl.u32 %v801, 7
  %v803 = vsub.s32 4, %v802
  %v804 = vrot.slane %v52, %v803
  %v805 = vlaneseq
  %v806 = vshrl.u32 %v805, 7
  %v807 = vsub.s32 4, %v806
  %v808 = vrot.slane %v53, %v807
  %v809 = vlaneseq
  %v810 = vshrl.u32 %v809, 7
  %v811 = vsub.s32 4, %v810
  %v812 = vrot.slane %v54, %v811
  %v813 = vmul.f32 %v58, %v800
  %v814 = vmul.f32 %v58, %v804
  %v815 = vmul.f32 %v58, %v808
  %v816 = vmul.f32 %v58, %v812
  %v817 = vmul.f32 %v63, %v800
  %v818 = vmul.f32 %v63, %v804
  %v819 = vmul.f32 %v63, %v808
  %v820 = vmul.f32 %v63, %v812
  %v821 = vmul.f32 %v68, %v800
  %v822 = vmul.f32 %v68, %v804
  %v823 = vmul.f32 %v68, %v808
  %v824 = vmul.f32 %v68, %v812
  %v825 = vmul.f32 %v73, %v800
  %v826 = vmul.f32 %v73, %v804
  %v827 = vmul.f32 %v73, %v808
  %v828 = vmul.f32 %v73, %v812
  %v829 = vmul.f32 %v78, %v800
  %v830 = vmul.f32 %v78, %v804
  %v831 = vmul.f32 %v78, %v808
  %v832 = vmul.f32 %v78, %v812
  %v833 = vmul.f32 %v83, %v800
  %v834 = vmul.f32 %v83, %v804
  %v835 = vmul.f32 %v83, %v808
  %v836 = vmul.f32 %v83, %v812
  %v837 = vadd.f32 %v813, %v127
  %v838 = vadd.f32 %v814, %v127
  %v839 = vadd.f32 %v815, %v127
  %v840 = vadd.f32 %v816, %v127
  %v841 = vadd.f32 %v817, %v131
  %v842 = vadd.f32 %v818, %v131
  %v843 = vadd.f32 %v819, %v131
  %v844 = vadd.f32 %v820, %v131
  %v845 = vadd.f32 %v821, %v135
  %v846 = vadd.f32 %v822, %v135
  %v847 = vadd.f32 %v823, %v135
  %v848 = vadd.f32 %v824, %v135
  %v849 = vadd.f32 %v825, %v139
  %v850 = vadd.f32 %v826, %v139
  %v851 = vadd.f32 %v827, %v139
  %v852 = vadd.f32 %v828, %v139
  %v853 = vadd.f32 %v829, %v143
  %v854 = vadd.f32 %v830, %v143
  %v855 = vadd.f32 %v831, %v143
  %v856 = vadd.f32 %v832, %v143
  %v857 = vadd.f32 %v833, %v147
  %v858 = vadd.f32 %v834, %v147
  %v859 = vadd.f32 %v835, %v147
  %v860 = vadd.f32 %v836, %v147
  %v861 = vmax.f32 %v837, 0.0
  %v862 = vmax.f32 %v838, 0.0
  %v863 = vmax.f32 %v839, 0.0
  %v864 = vmax.f32 %v840, 0.0
  %v865 = vmax.f32 %v841, 0.0
  %v866 = vmax.f32 %v842, 0.0
  %v867 = vmax.f32 %v843, 0.0
  %v868 = vmax.f32 %v844, 0.0
  %v869 = vmax.f32 %v845, 0.0
  %v870 = vmax.f32 %v846, 0.0
  %v871 = vmax.f32 %v847, 0.0
  %v872 = vmax.f32 %v848, 0.0
  %v873 = vmax.f32 %v849, 0.0
  %v874 = vmax.f32 %v850, 0.0
  %v875 = vmax.f32 %v851, 0.0
  %v876 = vmax.f32 %v852, 0.0
  %v877 = vmax.f32 %v853, 0.0
  %v878 = vmax.f32 %v854, 0.0
  %v879 = vmax.f32 %v855, 0.0
  %v880 = vmax.f32 %v856, 0.0
  %v881 = vmax.f32 %v857, 0.0
  %v882 = vmax.f32 %v858, 0.0
  %v883 = vmax.f32 %v859, 0.0
  %v884 = vmax.f32 %v860, 0.0
  %v885 = vpack.c.bf16 %v865, %v861
  %v886 = vpack.c.bf16 %v866, %v862
  %v887 = vpack.c.bf16 %v867, %v863
  %v888 = vpack.c.bf16 %v868, %v864
  %v889 = vpack.c.bf16 %v873, %v869
  %v890 = vpack.c.bf16 %v874, %v870
  %v891 = vpack.c.bf16 %v875, %v871
  %v892 = vpack.c.bf16 %v876, %v872
  %v893 = vpack.c.bf16 %v881, %v877
  %v894 = vpack.c.bf16 %v882, %v878
  %v895 = vpack.c.bf16 %v883, %v879
  %v896 = vpack.c.bf16 %v884, %v880
  %v909 = vunpack.c.l.b16 %v885
  %v910 = vunpack.c.l.b16 %v886
  %v911 = vunpack.c.l.b16 %v887
  %v912 = vunpack.c.l.b16 %v888
  %v913 = vunpack.c.h.b16 %v885
  %v914 = vunpack.c.h.b16 %v886
  %v915 = vunpack.c.h.b16 %v887
  %v916 = vunpack.c.h.b16 %v888
  %v917 = vunpack.c.l.b16 %v889
  %v918 = vunpack.c.l.b16 %v890
  %v919 = vunpack.c.l.b16 %v891
  %v920 = vunpack.c.l.b16 %v892
  %v921 = vunpack.c.h.b16 %v889
  %v922 = vunpack.c.h.b16 %v890
  %v923 = vunpack.c.h.b16 %v891
  %v924 = vunpack.c.h.b16 %v892
  %v925 = vunpack.c.l.b16 %v893
  %v926 = vunpack.c.l.b16 %v894
  %v927 = vunpack.c.l.b16 %v895
  %v928 = vunpack.c.l.b16 %v896
  %v929 = vunpack.c.h.b16 %v893
  %v930 = vunpack.c.h.b16 %v894
  %v931 = vunpack.c.h.b16 %v895
  %v932 = vunpack.c.h.b16 %v896
  %v933 = vpack.c.b16 %v910, %v909
  %v934 = vpack.c.b16 %v912, %v911
  %v935 = vpack.c.b16 %v914, %v913
  %v936 = vpack.c.b16 %v916, %v915
  %v937 = vpack.c.b16 %v918, %v917
  %v938 = vpack.c.b16 %v920, %v919
  %v939 = vpack.c.b16 %v922, %v921
  %v940 = vpack.c.b16 %v924, %v923
  %v941 = vpack.c.b16 %v926, %v925
  %v942 = vpack.c.b16 %v928, %v927
  %v943 = vpack.c.b16 %v930, %v929
  %v944 = vpack.c.b16 %v932, %v931
  %957 = vst [vmem:[#allocation2 + $0x180] sm:$0xff] %v933
  %958 = vst [vmem:[#allocation2 + $0x188] sm:$0xff] %v934
  %959 = vst [vmem:[#allocation2 + $0x190] sm:$0xff] %v935
  %960 = vst [vmem:[#allocation2 + $0x198] sm:$0xff] %v936
  %961 = vst [vmem:[#allocation2 + $0x1a0] sm:$0xff] %v937
  %962 = vst [vmem:[#allocation2 + $0x1a8] sm:$0xff] %v938
  %963 = vst [vmem:[#allocation2 + $0x1b0] sm:$0xff] %v939
  %964 = vst [vmem:[#allocation2 + $0x1b8] sm:$0xff] %v940
  %965 = vst [vmem:[#allocation2 + $0x1c0] sm:$0xff] %v941
  %966 = vst [vmem:[#allocation2 + $0x1c8] sm:$0xff] %v942
  %967 = vst [vmem:[#allocation2 + $0x1d0] sm:$0xff] %v943
  %968 = vst [vmem:[#allocation2 + $0x1d8] sm:$0xff] %v944
  %v969 = vld [vmem:[#allocation2] sm:$0xff]
  %v970 = vld [vmem:[#allocation2 + $0x8] sm:$0xff]
  %v971 = vld [vmem:[#allocation2 + $0x10] sm:$0xff]
  %v972 = vld [vmem:[#allocation2 + $0x18] sm:$0xff]
  %v973 = vld [vmem:[#allocation2 + $0x20] sm:$0xff]
  %v974 = vld [vmem:[#allocation2 + $0x28] sm:$0xff]
  %v975 = vld [vmem:[#allocation2 + $0x30] sm:$0xff]
  %v976 = vld [vmem:[#allocation2 + $0x38] sm:$0xff]
  %v977 = vld [vmem:[#allocation2 + $0x40] sm:$0xff]
  %v978 = vld [vmem:[#allocation2 + $0x48] sm:$0xff]
  %v979 = vld [vmem:[#allocation2 + $0x50] sm:$0xff]
  %v980 = vld [vmem:[#allocation2 + $0x58] sm:$0xff]
  %v981 = vld [vmem:[#allocation2 + $0x60] sm:$0xff]
  %v982 = vld [vmem:[#allocation2 + $0x68] sm:$0xff]
  %v983 = vld [vmem:[#allocation2 + $0x70] sm:$0xff]
  %v984 = vld [vmem:[#allocation2 + $0x78] sm:$0xff]
  %v985 = vld [vmem:[#allocation2 + $0x80] sm:$0xff]
  %v986 = vld [vmem:[#allocation2 + $0x88] sm:$0xff]
  %v987 = vld [vmem:[#allocation2 + $0x90] sm:$0xff]
  %v988 = vld [vmem:[#allocation2 + $0x98] sm:$0xff]
  %v989 = vld [vmem:[#allocation2 + $0xa0] sm:$0xff]
  %v990 = vld [vmem:[#allocation2 + $0xa8] sm:$0xff]
  %v991 = vld [vmem:[#allocation2 + $0xb0] sm:$0xff]
  %v992 = vld [vmem:[#allocation2 + $0xb8] sm:$0xff]
  %v993 = vld [vmem:[#allocation2 + $0xc0] sm:$0xff]
  %v994 = vld [vmem:[#allocation2 + $0xc8] sm:$0xff]
  %v995 = vld [vmem:[#allocation2 + $0xd0] sm:$0xff]
  %v996 = vld [vmem:[#allocation2 + $0xd8] sm:$0xff]
  %v997 = vld [vmem:[#allocation2 + $0xe0] sm:$0xff]
  %v998 = vld [vmem:[#allocation2 + $0xe8] sm:$0xff]
  %v999 = vld [vmem:[#allocation2 + $0xf0] sm:$0xff]
  %v1000 = vld [vmem:[#allocation2 + $0xf8] sm:$0xff]
  %v1001 = vld [vmem:[#allocation2 + $0x100] sm:$0xff]
  %v1002 = vld [vmem:[#allocation2 + $0x108] sm:$0xff]
  %v1003 = vld [vmem:[#allocation2 + $0x110] sm:$0xff]
  %v1004 = vld [vmem:[#allocation2 + $0x118] sm:$0xff]
  %v1005 = vld [vmem:[#allocation2 + $0x120] sm:$0xff]
  %v1006 = vld [vmem:[#allocation2 + $0x128] sm:$0xff]
  %v1007 = vld [vmem:[#allocation2 + $0x130] sm:$0xff]
  %v1008 = vld [vmem:[#allocation2 + $0x138] sm:$0xff]
  %v1009 = vld [vmem:[#allocation2 + $0x140] sm:$0xff]
  %v1010 = vld [vmem:[#allocation2 + $0x148] sm:$0xff]
  %v1011 = vld [vmem:[#allocation2 + $0x150] sm:$0xff]
  %v1012 = vld [vmem:[#allocation2 + $0x158] sm:$0xff]
  %v1013 = vld [vmem:[#allocation2 + $0x160] sm:$0xff]
  %v1014 = vld [vmem:[#allocation2 + $0x168] sm:$0xff]
  %v1015 = vld [vmem:[#allocation2 + $0x170] sm:$0xff]
  %v1016 = vld [vmem:[#allocation2 + $0x178] sm:$0xff]
  %v1017 = vld [vmem:[#allocation2 + $0x180] sm:$0xff]
  %v1018 = vld [vmem:[#allocation2 + $0x188] sm:$0xff]
  %v1019 = vld [vmem:[#allocation2 + $0x190] sm:$0xff]
  %v1020 = vld [vmem:[#allocation2 + $0x198] sm:$0xff]
  %v1021 = vld [vmem:[#allocation2 + $0x1a0] sm:$0xff]
  %v1022 = vld [vmem:[#allocation2 + $0x1a8] sm:$0xff]
  %v1023 = vld [vmem:[#allocation2 + $0x1b0] sm:$0xff]
  %v1024 = vld [vmem:[#allocation2 + $0x1b8] sm:$0xff]
  %v1025 = vld [vmem:[#allocation2 + $0x1c0] sm:$0xff]
  %v1026 = vld [vmem:[#allocation2 + $0x1c8] sm:$0xff]
  %v1027 = vld [vmem:[#allocation2 + $0x1d0] sm:$0xff]
  %v1028 = vld [vmem:[#allocation2 + $0x1d8] sm:$0xff]
  %v1059 = vunpack.c.l.b16 %v21
  %v1060 = vunpack.c.h.b16 %v21
  %v1061 = vunpack.c.l.b16 %v22
  %v1062 = vunpack.c.h.b16 %v22
  %v1063 = vunpack.c.l.b16 %v23
  %v1064 = vunpack.c.h.b16 %v23
  %v1065 = vunpack.c.l.b16 %v24
  %v1066 = vunpack.c.h.b16 %v24
  %v1067 = vunpack.c.l.b16 %v25
  %v1068 = vunpack.c.h.b16 %v25
  %v1069 = vunpack.c.l.b16 %v26
  %v1070 = vunpack.c.h.b16 %v26
  %v1071 = vunpack.c.l.b16 %v27
  %v1072 = vunpack.c.h.b16 %v27
  %v1073 = vunpack.c.l.b16 %v28
  %v1074 = vunpack.c.h.b16 %v28
  %v1075 = vunpack.c.l.b16 %v29
  %v1076 = vunpack.c.h.b16 %v29
  %v1077 = vunpack.c.l.b16 %v30
  %v1078 = vunpack.c.h.b16 %v30
  %v1079 = vunpack.c.l.b16 %v31
  %v1080 = vunpack.c.h.b16 %v31
  %v1081 = vunpack.c.l.b16 %v32
  %v1082 = vunpack.c.h.b16 %v32
  %v1083 = vunpack.c.l.b16 %v33
  %v1084 = vunpack.c.h.b16 %v33
  %v1085 = vunpack.c.l.b16 %v34
  %v1086 = vunpack.c.h.b16 %v34
  %v1087 = vunpack.c.l.b16 %v35
  %v1088 = vunpack.c.h.b16 %v35
  %v1089 = vunpack.c.l.b16 %v36
  %v1090 = vunpack.c.h.b16 %v36
  %v1091 = vunpack.c.l.b16 %v37
  %v1092 = vunpack.c.h.b16 %v37
  %v1093 = vunpack.c.l.b16 %v38
  %v1094 = vunpack.c.h.b16 %v38
  %v1095 = vunpack.c.l.b16 %v39
  %v1096 = vunpack.c.h.b16 %v39
  %v1097 = vunpack.c.l.b16 %v40
  %v1098 = vunpack.c.h.b16 %v40
  %v1099 = vunpack.c.l.b16 %v41
  %v1100 = vunpack.c.h.b16 %v41
  %v1101 = vunpack.c.l.b16 %v42
  %v1102 = vunpack.c.h.b16 %v42
  %v1103 = vunpack.c.l.b16 %v43
  %v1104 = vunpack.c.h.b16 %v43
  %v1105 = vunpack.c.l.b16 %v44
  %v1106 = vunpack.c.h.b16 %v44
  %v1107 = vunpack.c.l.b16 %v45
  %v1108 = vunpack.c.h.b16 %v45
  %v1109 = vunpack.c.l.b16 %v46
  %v1110 = vunpack.c.h.b16 %v46
  %v1111 = vunpack.c.l.b16 %v47
  %v1112 = vunpack.c.h.b16 %v47
  %v1113 = vunpack.c.l.b16 %v48
  %v1114 = vunpack.c.h.b16 %v48
  %v1115 = vunpack.c.l.b16 %v49
  %v1116 = vunpack.c.h.b16 %v49
  %v1117 = vunpack.c.l.b16 %v50
  %v1118 = vunpack.c.h.b16 %v50
  %v1119 = vpack.c.b16 %v1061, %v1059
  %v1120 = vpack.c.b16 %v1062, %v1060
  %v1121 = vpack.c.b16 %v1065, %v1063
  %v1122 = vpack.c.b16 %v1066, %v1064
  %v1123 = vpack.c.b16 %v1069, %v1067
  %v1124 = vpack.c.b16 %v1070, %v1068
  %v1125 = vpack.c.b16 %v1073, %v1071
  %v1126 = vpack.c.b16 %v1074, %v1072
  %v1127 = vpack.c.b16 %v1077, %v1075
  %v1128 = vpack.c.b16 %v1078, %v1076
  %v1129 = vpack.c.b16 %v1081, %v1079
  %v1130 = vpack.c.b16 %v1082, %v1080
  %v1131 = vpack.c.b16 %v1085, %v1083
  %v1132 = vpack.c.b16 %v1086, %v1084
  %v1133 = vpack.c.b16 %v1089, %v1087
  %v1134 = vpack.c.b16 %v1090, %v1088
  %v1135 = vpack.c.b16 %v1093, %v1091
  %v1136 = vpack.c.b16 %v1094, %v1092
  %v1137 = vpack.c.b16 %v1097, %v1095
  %v1138 = vpack.c.b16 %v1098, %v1096
  %v1139 = vpack.c.b16 %v1101, %v1099
  %v1140 = vpack.c.b16 %v1102, %v1100
  %v1141 = vpack.c.b16 %v1105, %v1103
  %v1142 = vpack.c.b16 %v1106, %v1104
  %v1143 = vpack.c.b16 %v1109, %v1107
  %v1144 = vpack.c.b16 %v1110, %v1108
  %v1145 = vpack.c.b16 %v1113, %v1111
  %v1146 = vpack.c.b16 %v1114, %v1112
  %v1147 = vpack.c.b16 %v1117, %v1115
  %v1148 = vpack.c.b16 %v1118, %v1116
  %v1224 = vunpack.c.l.b16 %v969
  %v1225 = vunpack.c.h.b16 %v969
  %v1226 = vunpack.c.l.b16 %v970
  %v1227 = vunpack.c.h.b16 %v970
  %v1228 = vunpack.c.l.b16 %v971
  %v1229 = vunpack.c.h.b16 %v971
  %v1230 = vunpack.c.l.b16 %v972
  %v1231 = vunpack.c.h.b16 %v972
  %v1232 = vunpack.c.l.b16 %v973
  %v1233 = vunpack.c.h.b16 %v973
  %v1234 = vunpack.c.l.b16 %v974
  %v1235 = vunpack.c.h.b16 %v974
  %v1236 = vunpack.c.l.b16 %v975
  %v1237 = vunpack.c.h.b16 %v975
  %v1238 = vunpack.c.l.b16 %v976
  %v1239 = vunpack.c.h.b16 %v976
  %v1240 = vunpack.c.l.b16 %v977
  %v1241 = vunpack.c.h.b16 %v977
  %v1242 = vunpack.c.l.b16 %v978
  %v1243 = vunpack.c.h.b16 %v978
  %v1244 = vunpack.c.l.b16 %v979
  %v1245 = vunpack.c.h.b16 %v979
  %v1246 = vunpack.c.l.b16 %v980
  %v1247 = vunpack.c.h.b16 %v980
  %v1248 = vunpack.c.l.b16 %v981
  %v1249 = vunpack.c.h.b16 %v981
  %v1250 = vunpack.c.l.b16 %v982
  %v1251 = vunpack.c.h.b16 %v982
  %v1252 = vunpack.c.l.b16 %v983
  %v1253 = vunpack.c.h.b16 %v983
  %v1254 = vunpack.c.l.b16 %v984
  %v1255 = vunpack.c.h.b16 %v984
  %v1256 = vunpack.c.l.b16 %v985
  %v1257 = vunpack.c.h.b16 %v985
  %v1258 = vunpack.c.l.b16 %v986
  %v1259 = vunpack.c.h.b16 %v986
  %v1260 = vunpack.c.l.b16 %v987
  %v1261 = vunpack.c.h.b16 %v987
  %v1262 = vunpack.c.l.b16 %v988
  %v1263 = vunpack.c.h.b16 %v988
  %v1264 = vunpack.c.l.b16 %v989
  %v1265 = vunpack.c.h.b16 %v989
  %v1266 = vunpack.c.l.b16 %v990
  %v1267 = vunpack.c.h.b16 %v990
  %v1268 = vunpack.c.l.b16 %v991
  %v1269 = vunpack.c.h.b16 %v991
  %v1270 = vunpack.c.l.b16 %v992
  %v1271 = vunpack.c.h.b16 %v992
  %v1272 = vunpack.c.l.b16 %v993
  %v1273 = vunpack.c.h.b16 %v993
  %v1274 = vunpack.c.l.b16 %v994
  %v1275 = vunpack.c.h.b16 %v994
  %v1276 = vunpack.c.l.b16 %v995
  %v1277 = vunpack.c.h.b16 %v995
  %v1278 = vunpack.c.l.b16 %v996
  %v1279 = vunpack.c.h.b16 %v996
  %v1280 = vunpack.c.l.b16 %v997
  %v1281 = vunpack.c.h.b16 %v997
  %v1282 = vunpack.c.l.b16 %v998
  %v1283 = vunpack.c.h.b16 %v998
  %v1284 = vunpack.c.l.b16 %v999
  %v1285 = vunpack.c.h.b16 %v999
  %v1286 = vunpack.c.l.b16 %v1000
  %v1287 = vunpack.c.h.b16 %v1000
  %v1288 = vunpack.c.l.b16 %v1001
  %v1289 = vunpack.c.h.b16 %v1001
  %v1290 = vunpack.c.l.b16 %v1002
  %v1291 = vunpack.c.h.b16 %v1002
  %v1292 = vunpack.c.l.b16 %v1003
  %v1293 = vunpack.c.h.b16 %v1003
  %v1294 = vunpack.c.l.b16 %v1004
  %v1295 = vunpack.c.h.b16 %v1004
  %v1296 = vunpack.c.l.b16 %v1005
  %v1297 = vunpack.c.h.b16 %v1005
  %v1298 = vunpack.c.l.b16 %v1006
  %v1299 = vunpack.c.h.b16 %v1006
  %v1300 = vunpack.c.l.b16 %v1007
  %v1301 = vunpack.c.h.b16 %v1007
  %v1302 = vunpack.c.l.b16 %v1008
  %v1303 = vunpack.c.h.b16 %v1008
  %v1304 = vunpack.c.l.b16 %v1009
  %v1305 = vunpack.c.h.b16 %v1009
  %v1306 = vunpack.c.l.b16 %v1010
  %v1307 = vunpack.c.h.b16 %v1010
  %v1308 = vunpack.c.l.b16 %v1011
  %v1309 = vunpack.c.h.b16 %v1011
  %v1310 = vunpack.c.l.b16 %v1012
  %v1311 = vunpack.c.h.b16 %v1012
  %v1312 = vunpack.c.l.b16 %v1013
  %v1313 = vunpack.c.h.b16 %v1013
  %v1314 = vunpack.c.l.b16 %v1014
  %v1315 = vunpack.c.h.b16 %v1014
  %v1316 = vunpack.c.l.b16 %v1015
  %v1317 = vunpack.c.h.b16 %v1015
  %v1318 = vunpack.c.l.b16 %v1016
  %v1319 = vunpack.c.h.b16 %v1016
  %v1320 = vunpack.c.l.b16 %v1017
  %v1321 = vunpack.c.h.b16 %v1017
  %v1322 = vunpack.c.l.b16 %v1018
  %v1323 = vunpack.c.h.b16 %v1018
  %v1324 = vunpack.c.l.b16 %v1019
  %v1325 = vunpack.c.h.b16 %v1019
  %v1326 = vunpack.c.l.b16 %v1020
  %v1327 = vunpack.c.h.b16 %v1020
  %v1328 = vunpack.c.l.b16 %v1021
  %v1329 = vunpack.c.h.b16 %v1021
  %v1330 = vunpack.c.l.b16 %v1022
  %v1331 = vunpack.c.h.b16 %v1022
  %v1332 = vunpack.c.l.b16 %v1023
  %v1333 = vunpack.c.h.b16 %v1023
  %v1334 = vunpack.c.l.b16 %v1024
  %v1335 = vunpack.c.h.b16 %v1024
  %v1336 = vunpack.c.l.b16 %v1025
  %v1337 = vunpack.c.h.b16 %v1025
  %v1338 = vunpack.c.l.b16 %v1026
  %v1339 = vunpack.c.h.b16 %v1026
  %v1340 = vunpack.c.l.b16 %v1027
  %v1341 = vunpack.c.h.b16 %v1027
  %v1342 = vunpack.c.l.b16 %v1028
  %v1343 = vunpack.c.h.b16 %v1028
  %v1344 = vpack.c.b16 %v1228, %v1224
  %v1345 = vpack.c.b16 %v1229, %v1225
  %v1346 = vpack.c.b16 %v1230, %v1226
  %v1347 = vpack.c.b16 %v1231, %v1227
  %v1348 = vpack.c.b16 %v1236, %v1232
  %v1349 = vpack.c.b16 %v1237, %v1233
  %v1350 = vpack.c.b16 %v1238, %v1234
  %v1351 = vpack.c.b16 %v1239, %v1235
  %v1352 = vpack.c.b16 %v1244, %v1240
  %v1353 = vpack.c.b16 %v1245, %v1241
  %v1354 = vpack.c.b16 %v1246, %v1242
  %v1355 = vpack.c.b16 %v1247, %v1243
  %v1356 = vpack.c.b16 %v1252, %v1248
  %v1357 = vpack.c.b16 %v1253, %v1249
  %v1358 = vpack.c.b16 %v1254, %v1250
  %v1359 = vpack.c.b16 %v1255, %v1251
  %v1360 = vpack.c.b16 %v1260, %v1256
  %v1361 = vpack.c.b16 %v1261, %v1257
  %v1362 = vpack.c.b16 %v1262, %v1258
  %v1363 = vpack.c.b16 %v1263, %v1259
  %v1364 = vpack.c.b16 %v1268, %v1264
  %v1365 = vpack.c.b16 %v1269, %v1265
  %v1366 = vpack.c.b16 %v1270, %v1266
  %v1367 = vpack.c.b16 %v1271, %v1267
  %v1368 = vpack.c.b16 %v1276, %v1272
  %v1369 = vpack.c.b16 %v1277, %v1273
  %v1370 = vpack.c.b16 %v1278, %v1274
  %v1371 = vpack.c.b16 %v1279, %v1275
  %v1372 = vpack.c.b16 %v1284, %v1280
  %v1373 = vpack.c.b16 %v1285, %v1281
  %v1374 = vpack.c.b16 %v1286, %v1282
  %v1375 = vpack.c.b16 %v1287, %v1283
  %v1376 = vpack.c.b16 %v1292, %v1288
  %v1377 = vpack.c.b16 %v1293, %v1289
  %v1378 = vpack.c.b16 %v1294, %v1290
  %v1379 = vpack.c.b16 %v1295, %v1291
  %v1380 = vpack.c.b16 %v1300, %v1296
  %v1381 = vpack.c.b16 %v1301, %v1297
  %v1382 = vpack.c.b16 %v1302, %v1298
  %v1383 = vpack.c.b16 %v1303, %v1299
  %v1384 = vpack.c.b16 %v1308, %v1304
  %v1385 = vpack.c.b16 %v1309, %v1305
  %v1386 = vpack.c.b16 %v1310, %v1306
  %v1387 = vpack.c.b16 %v1311, %v1307
  %v1388 = vpack.c.b16 %v1316, %v1312
  %v1389 = vpack.c.b16 %v1317, %v1313
  %v1390 = vpack.c.b16 %v1318, %v1314
  %v1391 = vpack.c.b16 %v1319, %v1315
  %v1392 = vpack.c.b16 %v1324, %v1320
  %v1393 = vpack.c.b16 %v1325, %v1321
  %v1394 = vpack.c.b16 %v1326, %v1322
  %v1395 = vpack.c.b16 %v1327, %v1323
  %v1396 = vpack.c.b16 %v1332, %v1328
  %v1397 = vpack.c.b16 %v1333, %v1329
  %v1398 = vpack.c.b16 %v1334, %v1330
  %v1399 = vpack.c.b16 %v1335, %v1331
  %v1400 = vpack.c.b16 %v1340, %v1336
  %v1401 = vpack.c.b16 %v1341, %v1337
  %v1402 = vpack.c.b16 %v1342, %v1338
  %v1403 = vpack.c.b16 %v1343, %v1339
  %vm1464 = vcmask 916480
  %v1466 = vsel %vm1464, %v1120, 0
  %v1469 = vsel %vm1464, %v1122, 0
  %v1472 = vsel %vm1464, %v1124, 0
  %v1475 = vsel %vm1464, %v1126, 0
  %v1478 = vsel %vm1464, %v1128, 0
  %v1481 = vsel %vm1464, %v1130, 0
  %v1484 = vsel %vm1464, %v1132, 0
  %v1487 = vsel %vm1464, %v1134, 0
  %v1490 = vsel %vm1464, %v1136, 0
  %v1493 = vsel %vm1464, %v1138, 0
  %v1496 = vsel %vm1464, %v1140, 0
  %v1499 = vsel %vm1464, %v1142, 0
  %v1502 = vsel %vm1464, %v1144, 0
  %v1505 = vsel %vm1464, %v1146, 0
  %v1508 = vsel %vm1464, %v1148, 0
  %1510 = vmatprep.subr.bf16.mxu0 %v1373
  %1511 = vmatpush1.bf16.msra.mxu0 %v1372
  %1512 = vmatprep.subr.bf16.mxu0 %v1369
  %1513 = vmatpush1.bf16.msra.mxu0 %v1368
  %1514 = vmatprep.subr.bf16.mxu0 %v1365
  %1515 = vmatpush1.bf16.msra.mxu0 %v1364
  %1516 = vmatprep.subr.bf16.mxu0 %v1361
  %1517 = vmatpush1.bf16.msra.mxu0 %v1360
  %1518 = vmatprep.subr.bf16.mxu0 %v1357
  %1519 = vmatpush1.bf16.msra.mxu0 %v1356
  %1520 = vmatprep.subr.bf16.mxu0 %v1353
  %1521 = vmatpush1.bf16.msra.mxu0 %v1352
  %1522 = vmatprep.subr.bf16.mxu0 %v1349
  %1523 = vmatpush1.bf16.msra.mxu0 %v1348
  %1524 = vmatprep.subr.bf16.mxu0 %v1345
  %1525 = vmatpush1.bf16.msra.mxu0 %v1344
  %1526 = vmatprep.subr.bf16.mxu0 0
  %1527 = vmatpush2.bf16.msra.mxu0 0
  %1528 = vmatprep.subr.bf16.mxu0 %v1401
  %1529 = vmatpush2.bf16.msra.mxu0 %v1400
  %1530 = vmatprep.subr.bf16.mxu0 %v1397
  %1531 = vmatpush2.bf16.msra.mxu0 %v1396
  %1532 = vmatprep.subr.bf16.mxu0 %v1393
  %1533 = vmatpush2.bf16.msra.mxu0 %v1392
  %1534 = vmatprep.subr.bf16.mxu0 %v1389
  %1535 = vmatpush2.bf16.msra.mxu0 %v1388
  %1536 = vmatprep.subr.bf16.mxu0 %v1385
  %1537 = vmatpush2.bf16.msra.mxu0 %v1384
  %1538 = vmatprep.subr.bf16.mxu0 %v1381
  %1539 = vmatpush2.bf16.msra.mxu0 %v1380
  %1540 = vmatprep.subr.bf16.mxu0 %v1377
  %1541 = vmatpush2.bf16.msra.mxu0 %v1376
  %1542 = vmatprep.mubr.bf16.mxu0 %v1466
  %1543 = vmatmul.mubr.bf16.gmra.mxu0 %v1119
  %v1544 = vpop.f32.mrf.mxu0
  %v1545 = vadd.f32 0.0, %v1544
  %v1546 = vpop.f32.mrf.mxu0
  %v1547 = vadd.f32 0.0, %v1546
  %v1548 = vpop.f32.mrf.mxu0
  %v1549 = vadd.f32 0.0, %v1548
  %v1550 = vpop.f32.mrf.mxu0
  %v1551 = vadd.f32 0.0, %v1550
  %1552 = vmatprep.mubr.bf16.mxu0 %v1469
  %1553 = vmatmul.mubr.bf16.gmra.mxu0 %v1121
  %v1554 = vpop.f32.mrf.mxu0
  %v1555 = vadd.f32 0.0, %v1554
  %v1556 = vpop.f32.mrf.mxu0
  %v1557 = vadd.f32 0.0, %v1556
  %v1558 = vpop.f32.mrf.mxu0
  %v1559 = vadd.f32 0.0, %v1558
  %v1560 = vpop.f32.mrf.mxu0
  %v1561 = vadd.f32 0.0, %v1560
  %1562 = vmatprep.mubr.bf16.mxu0 %v1472
  %1563 = vmatmul.mubr.bf16.gmra.mxu0 %v1123
  %v1564 = vpop.f32.mrf.mxu0
  %v1565 = vadd.f32 0.0, %v1564
  %v1566 = vpop.f32.mrf.mxu0
  %v1567 = vadd.f32 0.0, %v1566
  %v1568 = vpop.f32.mrf.mxu0
  %v1569 = vadd.f32 0.0, %v1568
  %v1570 = vpop.f32.mrf.mxu0
  %v1571 = vadd.f32 0.0, %v1570
  %1572 = vmatprep.mubr.bf16.mxu0 %v1475
  %1573 = vmatmul.mubr.bf16.gmra.mxu0 %v1125
  %v1574 = vpop.f32.mrf.mxu0
  %v1575 = vadd.f32 0.0, %v1574
  %v1576 = vpop.f32.mrf.mxu0
  %v1577 = vadd.f32 0.0, %v1576
  %v1578 = vpop.f32.mrf.mxu0
  %v1579 = vadd.f32 0.0, %v1578
  %v1580 = vpop.f32.mrf.mxu0
  %v1581 = vadd.f32 0.0, %v1580
  %1582 = vmatprep.mubr.bf16.mxu0 %v1478
  %1583 = vmatmul.mubr.bf16.gmra.mxu0 %v1127
  %v1584 = vpop.f32.mrf.mxu0
  %v1585 = vadd.f32 0.0, %v1584
  %v1586 = vpop.f32.mrf.mxu0
  %v1587 = vadd.f32 0.0, %v1586
  %v1588 = vpop.f32.mrf.mxu0
  %v1589 = vadd.f32 0.0, %v1588
  %v1590 = vpop.f32.mrf.mxu0
  %v1591 = vadd.f32 0.0, %v1590
  %1592 = vmatprep.mubr.bf16.mxu0 %v1481
  %1593 = vmatmul.mubr.bf16.gmra.mxu0 %v1129
  %v1594 = vpop.f32.mrf.mxu0
  %v1595 = vadd.f32 0.0, %v1594
  %v1596 = vpop.f32.mrf.mxu0
  %v1597 = vadd.f32 0.0, %v1596
  %v1598 = vpop.f32.mrf.mxu0
  %v1599 = vadd.f32 0.0, %v1598
  %v1600 = vpop.f32.mrf.mxu0
  %v1601 = vadd.f32 0.0, %v1600
  %1602 = vmatprep.mubr.bf16.mxu0 %v1484
  %1603 = vmatmul.mubr.bf16.gmra.mxu0 %v1131
  %v1604 = vpop.f32.mrf.mxu0
  %v1605 = vadd.f32 0.0, %v1604
  %v1606 = vpop.f32.mrf.mxu0
  %v1607 = vadd.f32 0.0, %v1606
  %v1608 = vpop.f32.mrf.mxu0
  %v1609 = vadd.f32 0.0, %v1608
  %v1610 = vpop.f32.mrf.mxu0
  %v1611 = vadd.f32 0.0, %v1610
  %1612 = vmatprep.mubr.bf16.mxu0 %v1487
  %1613 = vmatmul.mubr.bf16.gmra.mxu0 %v1133
  %v1614 = vpop.f32.mrf.mxu0
  %v1615 = vadd.f32 0.0, %v1614
  %v1616 = vpop.f32.mrf.mxu0
  %v1617 = vadd.f32 0.0, %v1616
  %v1618 = vpop.f32.mrf.mxu0
  %v1619 = vadd.f32 0.0, %v1618
  %v1620 = vpop.f32.mrf.mxu0
  %v1621 = vadd.f32 0.0, %v1620
  %1622 = vmatprep.mubr.bf16.mxu0 %v1490
  %1623 = vmatmul.mubr.bf16.gmra.mxu0 %v1135
  %v1624 = vpop.f32.mrf.mxu0
  %v1625 = vadd.f32 0.0, %v1624
  %v1626 = vpop.f32.mrf.mxu0
  %v1627 = vadd.f32 0.0, %v1626
  %v1628 = vpop.f32.mrf.mxu0
  %v1629 = vadd.f32 0.0, %v1628
  %v1630 = vpop.f32.mrf.mxu0
  %v1631 = vadd.f32 0.0, %v1630
  %1632 = vmatprep.mubr.bf16.mxu0 %v1493
  %1633 = vmatmul.mubr.bf16.gmra.mxu0 %v1137
  %v1634 = vpop.f32.mrf.mxu0
  %v1635 = vadd.f32 0.0, %v1634
  %v1636 = vpop.f32.mrf.mxu0
  %v1637 = vadd.f32 0.0, %v1636
  %v1638 = vpop.f32.mrf.mxu0
  %v1639 = vadd.f32 0.0, %v1638
  %v1640 = vpop.f32.mrf.mxu0
  %v1641 = vadd.f32 0.0, %v1640
  %1642 = vmatprep.mubr.bf16.mxu0 %v1496
  %1643 = vmatmul.mubr.bf16.gmra.mxu0 %v1139
  %v1644 = vpop.f32.mrf.mxu0
  %v1645 = vadd.f32 0.0, %v1644
  %v1646 = vpop.f32.mrf.mxu0
  %v1647 = vadd.f32 0.0, %v1646
  %v1648 = vpop.f32.mrf.mxu0
  %v1649 = vadd.f32 0.0, %v1648
  %v1650 = vpop.f32.mrf.mxu0
  %v1651 = vadd.f32 0.0, %v1650
  %1652 = vmatprep.mubr.bf16.mxu0 %v1499
  %1653 = vmatmul.mubr.bf16.gmra.mxu0 %v1141
  %v1654 = vpop.f32.mrf.mxu0
  %v1655 = vadd.f32 0.0, %v1654
  %v1656 = vpop.f32.mrf.mxu0
  %v1657 = vadd.f32 0.0, %v1656
  %v1658 = vpop.f32.mrf.mxu0
  %v1659 = vadd.f32 0.0, %v1658
  %v1660 = vpop.f32.mrf.mxu0
  %v1661 = vadd.f32 0.0, %v1660
  %1662 = vmatprep.mubr.bf16.mxu0 %v1502
  %1663 = vmatmul.mubr.bf16.gmra.mxu0 %v1143
  %v1664 = vpop.f32.mrf.mxu0
  %v1665 = vadd.f32 0.0, %v1664
  %v1666 = vpop.f32.mrf.mxu0
  %v1667 = vadd.f32 0.0, %v1666
  %v1668 = vpop.f32.mrf.mxu0
  %v1669 = vadd.f32 0.0, %v1668
  %v1670 = vpop.f32.mrf.mxu0
  %v1671 = vadd.f32 0.0, %v1670
  %1672 = vmatprep.mubr.bf16.mxu0 %v1505
  %1673 = vmatmul.mubr.bf16.gmra.mxu0 %v1145
  %v1674 = vpop.f32.mrf.mxu0
  %v1675 = vadd.f32 0.0, %v1674
  %v1676 = vpop.f32.mrf.mxu0
  %v1677 = vadd.f32 0.0, %v1676
  %v1678 = vpop.f32.mrf.mxu0
  %v1679 = vadd.f32 0.0, %v1678
  %v1680 = vpop.f32.mrf.mxu0
  %v1681 = vadd.f32 0.0, %v1680
  %1682 = vmatprep.mubr.bf16.mxu0 %v1508
  %1683 = vmatmul.mubr.bf16.gmra.mxu0 %v1147
  %v1684 = vpop.f32.mrf.mxu0
  %v1685 = vadd.f32 0.0, %v1684
  %v1686 = vpop.f32.mrf.mxu0
  %v1687 = vadd.f32 0.0, %v1686
  %v1688 = vpop.f32.mrf.mxu0
  %v1689 = vadd.f32 0.0, %v1688
  %v1690 = vpop.f32.mrf.mxu0
  %v1691 = vadd.f32 0.0, %v1690
  %1692 = vdwg.mxu0
  %1693 = vmatprep.subr.bf16.mxu0 %v1375
  %1694 = vmatpush1.bf16.msra.mxu0 %v1374
  %1695 = vmatprep.subr.bf16.mxu0 %v1371
  %1696 = vmatpush1.bf16.msra.mxu0 %v1370
  %1697 = vmatprep.subr.bf16.mxu0 %v1367
  %1698 = vmatpush1.bf16.msra.mxu0 %v1366
  %1699 = vmatprep.subr.bf16.mxu0 %v1363
  %1700 = vmatpush1.bf16.msra.mxu0 %v1362
  %1701 = vmatprep.subr.bf16.mxu0 %v1359
  %1702 = vmatpush1.bf16.msra.mxu0 %v1358
  %1703 = vmatprep.subr.bf16.mxu0 %v1355
  %1704 = vmatpush1.bf16.msra.mxu0 %v1354
  %1705 = vmatprep.subr.bf16.mxu0 %v1351
  %1706 = vmatpush1.bf16.msra.mxu0 %v1350
  %1707 = vmatprep.subr.bf16.mxu0 %v1347
  %1708 = vmatpush1.bf16.msra.mxu0 %v1346
  %1709 = vmatprep.subr.bf16.mxu0 0
  %1710 = vmatpush2.bf16.msra.mxu0 0
  %1711 = vmatprep.subr.bf16.mxu0 %v1403
  %1712 = vmatpush2.bf16.msra.mxu0 %v1402
  %1713 = vmatprep.subr.bf16.mxu0 %v1399
  %1714 = vmatpush2.bf16.msra.mxu0 %v1398
  %1715 = vmatprep.subr.bf16.mxu0 %v1395
  %1716 = vmatpush2.bf16.msra.mxu0 %v1394
  %1717 = vmatprep.subr.bf16.mxu0 %v1391
  %1718 = vmatpush2.bf16.msra.mxu0 %v1390
  %1719 = vmatprep.subr.bf16.mxu0 %v1387
  %1720 = vmatpush2.bf16.msra.mxu0 %v1386
  %1721 = vmatprep.subr.bf16.mxu0 %v1383
  %1722 = vmatpush2.bf16.msra.mxu0 %v1382
  %1723 = vmatprep.subr.bf16.mxu0 %v1379
  %1724 = vmatpush2.bf16.msra.mxu0 %v1378
  %1725 = vmatprep.mubr.bf16.mxu0 %v1466
  %1726 = vmatmul.mubr.bf16.gmra.mxu0 %v1119
  %v1727 = vpop.f32.mrf.mxu0
  %v1728 = vadd.f32 0.0, %v1727
  %v1729 = vpop.f32.mrf.mxu0
  %v1730 = vadd.f32 0.0, %v1729
  %v1731 = vpop.f32.mrf.mxu0
  %v1732 = vadd.f32 0.0, %v1731
  %v1733 = vpop.f32.mrf.mxu0
  %v1734 = vadd.f32 0.0, %v1733
  %1735 = vmatprep.mubr.bf16.mxu0 %v1469
  %1736 = vmatmul.mubr.bf16.gmra.mxu0 %v1121
  %v1737 = vpop.f32.mrf.mxu0
  %v1738 = vadd.f32 0.0, %v1737
  %v1739 = vpop.f32.mrf.mxu0
  %v1740 = vadd.f32 0.0, %v1739
  %v1741 = vpop.f32.mrf.mxu0
  %v1742 = vadd.f32 0.0, %v1741
  %v1743 = vpop.f32.mrf.mxu0
  %v1744 = vadd.f32 0.0, %v1743
  %1745 = vmatprep.mubr.bf16.mxu0 %v1472
  %1746 = vmatmul.mubr.bf16.gmra.mxu0 %v1123
  %v1747 = vpop.f32.mrf.mxu0
  %v1748 = vadd.f32 0.0, %v1747
  %v1749 = vpop.f32.mrf.mxu0
  %v1750 = vadd.f32 0.0, %v1749
  %v1751 = vpop.f32.mrf.mxu0
  %v1752 = vadd.f32 0.0, %v1751
  %v1753 = vpop.f32.mrf.mxu0
  %v1754 = vadd.f32 0.0, %v1753
  %1755 = vmatprep.mubr.bf16.mxu0 %v1475
  %1756 = vmatmul.mubr.bf16.gmra.mxu0 %v1125
  %v1757 = vpop.f32.mrf.mxu0
  %v1758 = vadd.f32 0.0, %v1757
  %v1759 = vpop.f32.mrf.mxu0
  %v1760 = vadd.f32 0.0, %v1759
  %v1761 = vpop.f32.mrf.mxu0
  %v1762 = vadd.f32 0.0, %v1761
  %v1763 = vpop.f32.mrf.mxu0
  %v1764 = vadd.f32 0.0, %v1763
  %1765 = vmatprep.mubr.bf16.mxu0 %v1478
  %1766 = vmatmul.mubr.bf16.gmra.mxu0 %v1127
  %v1767 = vpop.f32.mrf.mxu0
  %v1768 = vadd.f32 0.0, %v1767
  %v1769 = vpop.f32.mrf.mxu0
  %v1770 = vadd.f32 0.0, %v1769
  %v1771 = vpop.f32.mrf.mxu0
  %v1772 = vadd.f32 0.0, %v1771
  %v1773 = vpop.f32.mrf.mxu0
  %v1774 = vadd.f32 0.0, %v1773
  %1775 = vmatprep.mubr.bf16.mxu0 %v1481
  %1776 = vmatmul.mubr.bf16.gmra.mxu0 %v1129
  %v1777 = vpop.f32.mrf.mxu0
  %v1778 = vadd.f32 0.0, %v1777
  %v1779 = vpop.f32.mrf.mxu0
  %v1780 = vadd.f32 0.0, %v1779
  %v1781 = vpop.f32.mrf.mxu0
  %v1782 = vadd.f32 0.0, %v1781
  %v1783 = vpop.f32.mrf.mxu0
  %v1784 = vadd.f32 0.0, %v1783
  %1785 = vmatprep.mubr.bf16.mxu0 %v1484
  %1786 = vmatmul.mubr.bf16.gmra.mxu0 %v1131
  %v1787 = vpop.f32.mrf.mxu0
  %v1788 = vadd.f32 0.0, %v1787
  %v1789 = vpop.f32.mrf.mxu0
  %v1790 = vadd.f32 0.0, %v1789
  %v1791 = vpop.f32.mrf.mxu0
  %v1792 = vadd.f32 0.0, %v1791
  %v1793 = vpop.f32.mrf.mxu0
  %v1794 = vadd.f32 0.0, %v1793
  %1795 = vmatprep.mubr.bf16.mxu0 %v1487
  %1796 = vmatmul.mubr.bf16.gmra.mxu0 %v1133
  %v1797 = vpop.f32.mrf.mxu0
  %v1798 = vadd.f32 0.0, %v1797
  %v1799 = vpop.f32.mrf.mxu0
  %v1800 = vadd.f32 0.0, %v1799
  %v1801 = vpop.f32.mrf.mxu0
  %v1802 = vadd.f32 0.0, %v1801
  %v1803 = vpop.f32.mrf.mxu0
  %v1804 = vadd.f32 0.0, %v1803
  %1805 = vmatprep.mubr.bf16.mxu0 %v1490
  %1806 = vmatmul.mubr.bf16.gmra.mxu0 %v1135
  %v1807 = vpop.f32.mrf.mxu0
  %v1808 = vadd.f32 0.0, %v1807
  %v1809 = vpop.f32.mrf.mxu0
  %v1810 = vadd.f32 0.0, %v1809
  %v1811 = vpop.f32.mrf.mxu0
  %v1812 = vadd.f32 0.0, %v1811
  %v1813 = vpop.f32.mrf.mxu0
  %v1814 = vadd.f32 0.0, %v1813
  %1815 = vmatprep.mubr.bf16.mxu0 %v1493
  %1816 = vmatmul.mubr.bf16.gmra.mxu0 %v1137
  %v1817 = vpop.f32.mrf.mxu0
  %v1818 = vadd.f32 0.0, %v1817
  %v1819 = vpop.f32.mrf.mxu0
  %v1820 = vadd.f32 0.0, %v1819
  %v1821 = vpop.f32.mrf.mxu0
  %v1822 = vadd.f32 0.0, %v1821
  %v1823 = vpop.f32.mrf.mxu0
  %v1824 = vadd.f32 0.0, %v1823
  %1825 = vmatprep.mubr.bf16.mxu0 %v1496
  %1826 = vmatmul.mubr.bf16.gmra.mxu0 %v1139
  %v1827 = vpop.f32.mrf.mxu0
  %v1828 = vadd.f32 0.0, %v1827
  %v1829 = vpop.f32.mrf.mxu0
  %v1830 = vadd.f32 0.0, %v1829
  %v1831 = vpop.f32.mrf.mxu0
  %v1832 = vadd.f32 0.0, %v1831
  %v1833 = vpop.f32.mrf.mxu0
  %v1834 = vadd.f32 0.0, %v1833
  %1835 = vmatprep.mubr.bf16.mxu0 %v1499
  %1836 = vmatmul.mubr.bf16.gmra.mxu0 %v1141
  %v1837 = vpop.f32.mrf.mxu0
  %v1838 = vadd.f32 0.0, %v1837
  %v1839 = vpop.f32.mrf.mxu0
  %v1840 = vadd.f32 0.0, %v1839
  %v1841 = vpop.f32.mrf.mxu0
  %v1842 = vadd.f32 0.0, %v1841
  %v1843 = vpop.f32.mrf.mxu0
  %v1844 = vadd.f32 0.0, %v1843
  %1845 = vmatprep.mubr.bf16.mxu0 %v1502
  %1846 = vmatmul.mubr.bf16.gmra.mxu0 %v1143
  %v1847 = vpop.f32.mrf.mxu0
  %v1848 = vadd.f32 0.0, %v1847
  %v1849 = vpop.f32.mrf.mxu0
  %v1850 = vadd.f32 0.0, %v1849
  %v1851 = vpop.f32.mrf.mxu0
  %v1852 = vadd.f32 0.0, %v1851
  %v1853 = vpop.f32.mrf.mxu0
  %v1854 = vadd.f32 0.0, %v1853
  %1855 = vmatprep.mubr.bf16.mxu0 %v1505
  %1856 = vmatmul.mubr.bf16.gmra.mxu0 %v1145
  %v1857 = vpop.f32.mrf.mxu0
  %v1858 = vadd.f32 0.0, %v1857
  %v1859 = vpop.f32.mrf.mxu0
  %v1860 = vadd.f32 0.0, %v1859
  %v1861 = vpop.f32.mrf.mxu0
  %v1862 = vadd.f32 0.0, %v1861
  %v1863 = vpop.f32.mrf.mxu0
  %v1864 = vadd.f32 0.0, %v1863
  %1865 = vmatprep.mubr.bf16.mxu0 %v1508
  %1866 = vmatmul.mubr.bf16.gmra.mxu0 %v1147
  %v1867 = vpop.f32.mrf.mxu0
  %v1868 = vadd.f32 0.0, %v1867
  %v1869 = vpop.f32.mrf.mxu0
  %v1870 = vadd.f32 0.0, %v1869
  %v1871 = vpop.f32.mrf.mxu0
  %v1872 = vadd.f32 0.0, %v1871
  %v1873 = vpop.f32.mrf.mxu0
  %v1874 = vadd.f32 0.0, %v1873
  %1875 = vdwg.mxu0
  %v1876 = vmax.f32 %v1545, 0.0
  %v1877 = vmax.f32 %v1547, 0.0
  %v1878 = vmax.f32 %v1728, 0.0
  %v1879 = vmax.f32 %v1730, 0.0
  %v1880 = vmax.f32 %v1549, 0.0
  %v1881 = vmax.f32 %v1551, 0.0
  %v1882 = vmax.f32 %v1732, 0.0
  %v1883 = vmax.f32 %v1734, 0.0
  %v1884 = vmax.f32 %v1555, 0.0
  %v1885 = vmax.f32 %v1557, 0.0
  %v1886 = vmax.f32 %v1738, 0.0
  %v1887 = vmax.f32 %v1740, 0.0
  %v1888 = vmax.f32 %v1559, 0.0
  %v1889 = vmax.f32 %v1561, 0.0
  %v1890 = vmax.f32 %v1742, 0.0
  %v1891 = vmax.f32 %v1744, 0.0
  %v1892 = vmax.f32 %v1565, 0.0
  %v1893 = vmax.f32 %v1567, 0.0
  %v1894 = vmax.f32 %v1748, 0.0
  %v1895 = vmax.f32 %v1750, 0.0
  %v1896 = vmax.f32 %v1569, 0.0
  %v1897 = vmax.f32 %v1571, 0.0
  %v1898 = vmax.f32 %v1752, 0.0
  %v1899 = vmax.f32 %v1754, 0.0
  %v1900 = vmax.f32 %v1575, 0.0
  %v1901 = vmax.f32 %v1577, 0.0
  %v1902 = vmax.f32 %v1758, 0.0
  %v1903 = vmax.f32 %v1760, 0.0
  %v1904 = vmax.f32 %v1579, 0.0
  %v1905 = vmax.f32 %v1581, 0.0
  %v1906 = vmax.f32 %v1762, 0.0
  %v1907 = vmax.f32 %v1764, 0.0
  %v1908 = vmax.f32 %v1585, 0.0
  %v1909 = vmax.f32 %v1587, 0.0
  %v1910 = vmax.f32 %v1768, 0.0
  %v1911 = vmax.f32 %v1770, 0.0
  %v1912 = vmax.f32 %v1589, 0.0
  %v1913 = vmax.f32 %v1591, 0.0
  %v1914 = vmax.f32 %v1772, 0.0
  %v1915 = vmax.f32 %v1774, 0.0
  %v1916 = vmax.f32 %v1595, 0.0
  %v1917 = vmax.f32 %v1597, 0.0
  %v1918 = vmax.f32 %v1778, 0.0
  %v1919 = vmax.f32 %v1780, 0.0
  %v1920 = vmax.f32 %v1599, 0.0
  %v1921 = vmax.f32 %v1601, 0.0
  %v1922 = vmax.f32 %v1782, 0.0
  %v1923 = vmax.f32 %v1784, 0.0
  %v1924 = vmax.f32 %v1605, 0.0
  %v1925 = vmax.f32 %v1607, 0.0
  %v1926 = vmax.f32 %v1788, 0.0
  %v1927 = vmax.f32 %v1790, 0.0
  %v1928 = vmax.f32 %v1609, 0.0
  %v1929 = vmax.f32 %v1611, 0.0
  %v1930 = vmax.f32 %v1792, 0.0
  %v1931 = vmax.f32 %v1794, 0.0
  %v1932 = vmax.f32 %v1615, 0.0
  %v1933 = vmax.f32 %v1617, 0.0
  %v1934 = vmax.f32 %v1798, 0.0
  %v1935 = vmax.f32 %v1800, 0.0
  %v1936 = vmax.f32 %v1619, 0.0
  %v1937 = vmax.f32 %v1621, 0.0
  %v1938 = vmax.f32 %v1802, 0.0
  %v1939 = vmax.f32 %v1804, 0.0
  %v1940 = vmax.f32 %v1625, 0.0
  %v1941 = vmax.f32 %v1627, 0.0
  %v1942 = vmax.f32 %v1808, 0.0
  %v1943 = vmax.f32 %v1810, 0.0
  %v1944 = vmax.f32 %v1629, 0.0
  %v1945 = vmax.f32 %v1631, 0.0
  %v1946 = vmax.f32 %v1812, 0.0
  %v1947 = vmax.f32 %v1814, 0.0
  %v1948 = vmax.f32 %v1635, 0.0
  %v1949 = vmax.f32 %v1637, 0.0
  %v1950 = vmax.f32 %v1818, 0.0
  %v1951 = vmax.f32 %v1820, 0.0
  %v1952 = vmax.f32 %v1639, 0.0
  %v1953 = vmax.f32 %v1641, 0.0
  %v1954 = vmax.f32 %v1822, 0.0
  %v1955 = vmax.f32 %v1824, 0.0
  %v1956 = vmax.f32 %v1645, 0.0
  %v1957 = vmax.f32 %v1647, 0.0
  %v1958 = vmax.f32 %v1828, 0.0
  %v1959 = vmax.f32 %v1830, 0.0
  %v1960 = vmax.f32 %v1649, 0.0
  %v1961 = vmax.f32 %v1651, 0.0
  %v1962 = vmax.f32 %v1832, 0.0
  %v1963 = vmax.f32 %v1834, 0.0
  %v1964 = vmax.f32 %v1655, 0.0
  %v1965 = vmax.f32 %v1657, 0.0
  %v1966 = vmax.f32 %v1838, 0.0
  %v1967 = vmax.f32 %v1840, 0.0
  %v1968 = vmax.f32 %v1659, 0.0
  %v1969 = vmax.f32 %v1661, 0.0
  %v1970 = vmax.f32 %v1842, 0.0
  %v1971 = vmax.f32 %v1844, 0.0
  %v1972 = vmax.f32 %v1665, 0.0
  %v1973 = vmax.f32 %v1667, 0.0
  %v1974 = vmax.f32 %v1848, 0.0
  %v1975 = vmax.f32 %v1850, 0.0
  %v1976 = vmax.f32 %v1669, 0.0
  %v1977 = vmax.f32 %v1671, 0.0
  %v1978 = vmax.f32 %v1852, 0.0
  %v1979 = vmax.f32 %v1854, 0.0
  %v1980 = vmax.f32 %v1675, 0.0
  %v1981 = vmax.f32 %v1677, 0.0
  %v1982 = vmax.f32 %v1858, 0.0
  %v1983 = vmax.f32 %v1860, 0.0
  %v1984 = vmax.f32 %v1679, 0.0
  %v1985 = vmax.f32 %v1681, 0.0
  %v1986 = vmax.f32 %v1862, 0.0
  %v1987 = vmax.f32 %v1864, 0.0
  %v1988 = vmax.f32 %v1685, 0.0
  %v1989 = vmax.f32 %v1687, 0.0
  %v1990 = vmax.f32 %v1868, 0.0
  %v1991 = vmax.f32 %v1870, 0.0
  %v1992 = vmax.f32 %v1689, 0.0
  %v1993 = vmax.f32 %v1691, 0.0
  %v1994 = vmax.f32 %v1872, 0.0
  %v1995 = vmax.f32 %v1874, 0.0
  %1996 = vset.pattern.permute.xlu0 2
  %1997 = vperm.xlu0 %1996, %v15
  %v1998 = vpop.permute.xlu0 %1997
  %2000 = vset.pattern.permute.xlu0 2
  %2001 = vperm.xlu0 %2000, %v16
  %v2002 = vpop.permute.xlu0 %2001
  %2004 = vset.pattern.permute.xlu0 2
  %2005 = vperm.xlu0 %2004, %v17
  %v2006 = vpop.permute.xlu0 %2005
  %2008 = vset.pattern.permute.xlu0 2
  %2009 = vperm.xlu0 %2008, %v18
  %v2010 = vpop.permute.xlu0 %2009
  %2012 = vset.pattern.permute.xlu0 2
  %2013 = vperm.xlu0 %2012, %v19
  %v2014 = vpop.permute.xlu0 %2013
  %2016 = vset.pattern.permute.xlu0 2
  %2017 = vperm.xlu0 %2016, %v20
  %v2018 = vpop.permute.xlu0 %2017
  %v2020 = vmul.f32 %v1998, %v1876
  %v2021 = vmul.f32 %v1998, %v1877
  %v2022 = vmul.f32 %v1998, %v1878
  %v2023 = vmul.f32 %v1998, %v1879
  %v2024 = vmul.f32 %v2002, %v1880
  %v2025 = vmul.f32 %v2002, %v1881
  %v2026 = vmul.f32 %v2002, %v1882
  %v2027 = vmul.f32 %v2002, %v1883
  %v2028 = vmul.f32 %v2006, %v1884
  %v2029 = vmul.f32 %v2006, %v1885
  %v2030 = vmul.f32 %v2006, %v1886
  %v2031 = vmul.f32 %v2006, %v1887
  %v2032 = vmul.f32 %v2010, %v1888
  %v2033 = vmul.f32 %v2010, %v1889
  %v2034 = vmul.f32 %v2010, %v1890
  %v2035 = vmul.f32 %v2010, %v1891
  %v2036 = vmul.f32 %v2014, %v1892
  %v2037 = vmul.f32 %v2014, %v1893
  %v2038 = vmul.f32 %v2014, %v1894
  %v2039 = vmul.f32 %v2014, %v1895
  %v2040 = vmul.f32 %v2018, %v1896
  %v2041 = vmul.f32 %v2018, %v1897
  %v2042 = vmul.f32 %v2018, %v1898
  %v2043 = vmul.f32 %v2018, %v1899
  %v2044 = vadd.f32 %v2020, %v2024
  %v2045 = vadd.f32 %v2044, %v2028
  %v2046 = vadd.f32 %v2045, %v2032
  %v2047 = vadd.f32 %v2046, %v2036
  %v2048 = vadd.f32 %v2047, %v2040
  %v2049 = vrot.slane %v2048, 4
  %v2050 = vadd.f32 %v2048, %v2049
  %v2051 = vrot.slane %v2050, 2
  %v2052 = vadd.f32 %v2050, %v2051
  %v2053 = vrot.slane %v2052, 1
  %v2054 = vadd.f32 %v2052, %v2053
  %v2055 = vadd.f32 %v2021, %v2025
  %v2056 = vadd.f32 %v2055, %v2029
  %v2057 = vadd.f32 %v2056, %v2033
  %v2058 = vadd.f32 %v2057, %v2037
  %v2059 = vadd.f32 %v2058, %v2041
  %v2060 = vrot.slane %v2059, 4
  %v2061 = vadd.f32 %v2059, %v2060
  %v2062 = vrot.slane %v2061, 2
  %v2063 = vadd.f32 %v2061, %v2062
  %v2064 = vrot.slane %v2063, 1
  %v2065 = vadd.f32 %v2063, %v2064
  %v2066 = vadd.f32 %v2022, %v2026
  %v2067 = vadd.f32 %v2066, %v2030
  %v2068 = vadd.f32 %v2067, %v2034
  %v2069 = vadd.f32 %v2068, %v2038
  %v2070 = vadd.f32 %v2069, %v2042
  %v2071 = vrot.slane %v2070, 4
  %v2072 = vadd.f32 %v2070, %v2071
  %v2073 = vrot.slane %v2072, 2
  %v2074 = vadd.f32 %v2072, %v2073
  %v2075 = vrot.slane %v2074, 1
  %v2076 = vadd.f32 %v2074, %v2075
  %v2077 = vadd.f32 %v2023, %v2027
  %v2078 = vadd.f32 %v2077, %v2031
  %v2079 = vadd.f32 %v2078, %v2035
  %v2080 = vadd.f32 %v2079, %v2039
  %v2081 = vadd.f32 %v2080, %v2043
  %v2082 = vrot.slane %v2081, 4
  %v2083 = vadd.f32 %v2081, %v2082
  %v2084 = vrot.slane %v2083, 2
  %v2085 = vadd.f32 %v2083, %v2084
  %v2086 = vrot.slane %v2085, 1
  %v2087 = vadd.f32 %v2085, %v2086
  %v2092 = vcombine.low %v2054, %v2065
  %v2093 = vcombine.low %v2076, %v2087
  %v2095 = vunpack.c.l.s4 1966171168
  %v2096 = vunpack.c.0.s8 %v2095
  %v2097 = vlaneseq
  %v2098 = vshrl.u32 %v2097, 7
  %v2099 = vsub.s32 %v2096, %v2098
  %v2100 = vrot.slane %v2092, %v2099
  %v2102 = vunpack.c.l.s4 1966171168
  %v2103 = vunpack.c.0.s8 %v2102
  %v2104 = vlaneseq
  %v2105 = vshrl.u32 %v2104, 7
  %v2106 = vsub.s32 %v2103, %v2105
  %v2107 = vrot.slane %v2093, %v2106
  %v2108 = vcombine.low %v2100, %v2107
  %v2110 = vunpack.c.l.s4 1966171168
  %v2111 = vunpack.c.0.s8 %v2110
  %v2112 = vlaneseq
  %v2113 = vshrl.u32 %v2112, 7
  %v2114 = vsub.s32 %v2111, %v2113
  %v2115 = vrot.slane %v2108, %v2114
  %v2117 = vlaneseq
  %vm2118 = vcmp.ge.s32.totalorder %v2117, 0
  %vm2119 = vcmp.lt.s32.totalorder %v2117, 512
  %vm2120 = vmand %vm2118, %vm2119
  %2121 = vst.msk [vmem:[%s3] ss:$8 sm:$0xf] %vm2120, %v2115
  %2122 = vst.msk [vmem:[%s3] ss:$8 sm:$0x0] %vm2120, %v2115
  %v2123 = vmul.f32 %v1998, %v1900
  %v2124 = vmul.f32 %v1998, %v1901
  %v2125 = vmul.f32 %v1998, %v1902
  %v2126 = vmul.f32 %v1998, %v1903
  %v2127 = vmul.f32 %v2002, %v1904
  %v2128 = vmul.f32 %v2002, %v1905
  %v2129 = vmul.f32 %v2002, %v1906
  %v2130 = vmul.f32 %v2002, %v1907
  %v2131 = vmul.f32 %v2006, %v1908
  %v2132 = vmul.f32 %v2006, %v1909
  %v2133 = vmul.f32 %v2006, %v1910
  %v2134 = vmul.f32 %v2006, %v1911
  %v2135 = vmul.f32 %v2010, %v1912
  %v2136 = vmul.f32 %v2010, %v1913
  %v2137 = vmul.f32 %v2010, %v1914
  %v2138 = vmul.f32 %v2010, %v1915
  %v2139 = vmul.f32 %v2014, %v1916
  %v2140 = vmul.f32 %v2014, %v1917
  %v2141 = vmul.f32 %v2014, %v1918
  %v2142 = vmul.f32 %v2014, %v1919
  %v2143 = vmul.f32 %v2018, %v1920
  %v2144 = vmul.f32 %v2018, %v1921
  %v2145 = vmul.f32 %v2018, %v1922
  %v2146 = vmul.f32 %v2018, %v1923
  %v2147 = vadd.f32 %v2123, %v2127
  %v2148 = vadd.f32 %v2147, %v2131
  %v2149 = vadd.f32 %v2148, %v2135
  %v2150 = vadd.f32 %v2149, %v2139
  %v2151 = vadd.f32 %v2150, %v2143
  %v2152 = vrot.slane %v2151, 4
  %v2153 = vadd.f32 %v2151, %v2152
  %v2154 = vrot.slane %v2153, 2
  %v2155 = vadd.f32 %v2153, %v2154
  %v2156 = vrot.slane %v2155, 1
  %v2157 = vadd.f32 %v2155, %v2156
  %v2158 = vadd.f32 %v2124, %v2128
  %v2159 = vadd.f32 %v2158, %v2132
  %v2160 = vadd.f32 %v2159, %v2136
  %v2161 = vadd.f32 %v2160, %v2140
  %v2162 = vadd.f32 %v2161, %v2144
  %v2163 = vrot.slane %v2162, 4
  %v2164 = vadd.f32 %v2162, %v2163
  %v2165 = vrot.slane %v2164, 2
  %v2166 = vadd.f32 %v2164, %v2165
  %v2167 = vrot.slane %v2166, 1
  %v2168 = vadd.f32 %v2166, %v2167
  %v2169 = vadd.f32 %v2125, %v2129
  %v2170 = vadd.f32 %v2169, %v2133
  %v2171 = vadd.f32 %v2170, %v2137
  %v2172 = vadd.f32 %v2171, %v2141
  %v2173 = vadd.f32 %v2172, %v2145
  %v2174 = vrot.slane %v2173, 4
  %v2175 = vadd.f32 %v2173, %v2174
  %v2176 = vrot.slane %v2175, 2
  %v2177 = vadd.f32 %v2175, %v2176
  %v2178 = vrot.slane %v2177, 1
  %v2179 = vadd.f32 %v2177, %v2178
  %v2180 = vadd.f32 %v2126, %v2130
  %v2181 = vadd.f32 %v2180, %v2134
  %v2182 = vadd.f32 %v2181, %v2138
  %v2183 = vadd.f32 %v2182, %v2142
  %v2184 = vadd.f32 %v2183, %v2146
  %v2185 = vrot.slane %v2184, 4
  %v2186 = vadd.f32 %v2184, %v2185
  %v2187 = vrot.slane %v2186, 2
  %v2188 = vadd.f32 %v2186, %v2187
  %v2189 = vrot.slane %v2188, 1
  %v2190 = vadd.f32 %v2188, %v2189
  %v2195 = vcombine.low %v2157, %v2168
  %v2196 = vcombine.low %v2179, %v2190
  %v2198 = vunpack.c.l.s4 1966171168
  %v2199 = vunpack.c.0.s8 %v2198
  %v2200 = vlaneseq
  %v2201 = vshrl.u32 %v2200, 7
  %v2202 = vsub.s32 %v2199, %v2201
  %v2203 = vrot.slane %v2195, %v2202
  %v2205 = vunpack.c.l.s4 1966171168
  %v2206 = vunpack.c.0.s8 %v2205
  %v2207 = vlaneseq
  %v2208 = vshrl.u32 %v2207, 7
  %v2209 = vsub.s32 %v2206, %v2208
  %v2210 = vrot.slane %v2196, %v2209
  %v2211 = vcombine.low %v2203, %v2210
  %v2213 = vunpack.c.l.s4 1966171168
  %v2214 = vunpack.c.0.s8 %v2213
  %v2215 = vlaneseq
  %v2216 = vshrl.u32 %v2215, 7
  %v2217 = vsub.s32 %v2214, %v2216
  %v2218 = vrot.slane %v2211, %v2217
  %s2220 = scalar_lea.vmem %s3, 1
  %2221 = vst.msk [vmem:[%s2220] ss:$8 sm:$0xf] %vm2120, %v2218
  %2222 = vst.msk [vmem:[%s2220] ss:$8 sm:$0x0] %vm2120, %v2218
  %v2223 = vmul.f32 %v1998, %v1924
  %v2224 = vmul.f32 %v1998, %v1925
  %v2225 = vmul.f32 %v1998, %v1926
  %v2226 = vmul.f32 %v1998, %v1927
  %v2227 = vmul.f32 %v2002, %v1928
  %v2228 = vmul.f32 %v2002, %v1929
  %v2229 = vmul.f32 %v2002, %v1930
  %v2230 = vmul.f32 %v2002, %v1931
  %v2231 = vmul.f32 %v2006, %v1932
  %v2232 = vmul.f32 %v2006, %v1933
  %v2233 = vmul.f32 %v2006, %v1934
  %v2234 = vmul.f32 %v2006, %v1935
  %v2235 = vmul.f32 %v2010, %v1936
  %v2236 = vmul.f32 %v2010, %v1937
  %v2237 = vmul.f32 %v2010, %v1938
  %v2238 = vmul.f32 %v2010, %v1939
  %v2239 = vmul.f32 %v2014, %v1940
  %v2240 = vmul.f32 %v2014, %v1941
  %v2241 = vmul.f32 %v2014, %v1942
  %v2242 = vmul.f32 %v2014, %v1943
  %v2243 = vmul.f32 %v2018, %v1944
  %v2244 = vmul.f32 %v2018, %v1945
  %v2245 = vmul.f32 %v2018, %v1946
  %v2246 = vmul.f32 %v2018, %v1947
  %v2247 = vadd.f32 %v2223, %v2227
  %v2248 = vadd.f32 %v2247, %v2231
  %v2249 = vadd.f32 %v2248, %v2235
  %v2250 = vadd.f32 %v2249, %v2239
  %v2251 = vadd.f32 %v2250, %v2243
  %v2252 = vrot.slane %v2251, 4
  %v2253 = vadd.f32 %v2251, %v2252
  %v2254 = vrot.slane %v2253, 2
  %v2255 = vadd.f32 %v2253, %v2254
  %v2256 = vrot.slane %v2255, 1
  %v2257 = vadd.f32 %v2255, %v2256
  %v2258 = vadd.f32 %v2224, %v2228
  %v2259 = vadd.f32 %v2258, %v2232
  %v2260 = vadd.f32 %v2259, %v2236
  %v2261 = vadd.f32 %v2260, %v2240
  %v2262 = vadd.f32 %v2261, %v2244
  %v2263 = vrot.slane %v2262, 4
  %v2264 = vadd.f32 %v2262, %v2263
  %v2265 = vrot.slane %v2264, 2
  %v2266 = vadd.f32 %v2264, %v2265
  %v2267 = vrot.slane %v2266, 1
  %v2268 = vadd.f32 %v2266, %v2267
  %v2269 = vadd.f32 %v2225, %v2229
  %v2270 = vadd.f32 %v2269, %v2233
  %v2271 = vadd.f32 %v2270, %v2237
  %v2272 = vadd.f32 %v2271, %v2241
  %v2273 = vadd.f32 %v2272, %v2245
  %v2274 = vrot.slane %v2273, 4
  %v2275 = vadd.f32 %v2273, %v2274
  %v2276 = vrot.slane %v2275, 2
  %v2277 = vadd.f32 %v2275, %v2276
  %v2278 = vrot.slane %v2277, 1
  %v2279 = vadd.f32 %v2277, %v2278
  %v2280 = vadd.f32 %v2226, %v2230
  %v2281 = vadd.f32 %v2280, %v2234
  %v2282 = vadd.f32 %v2281, %v2238
  %v2283 = vadd.f32 %v2282, %v2242
  %v2284 = vadd.f32 %v2283, %v2246
  %v2285 = vrot.slane %v2284, 4
  %v2286 = vadd.f32 %v2284, %v2285
  %v2287 = vrot.slane %v2286, 2
  %v2288 = vadd.f32 %v2286, %v2287
  %v2289 = vrot.slane %v2288, 1
  %v2290 = vadd.f32 %v2288, %v2289
  %v2295 = vcombine.low %v2257, %v2268
  %v2296 = vcombine.low %v2279, %v2290
  %v2298 = vunpack.c.l.s4 1966171168
  %v2299 = vunpack.c.0.s8 %v2298
  %v2300 = vlaneseq
  %v2301 = vshrl.u32 %v2300, 7
  %v2302 = vsub.s32 %v2299, %v2301
  %v2303 = vrot.slane %v2295, %v2302
  %v2305 = vunpack.c.l.s4 1966171168
  %v2306 = vunpack.c.0.s8 %v2305
  %v2307 = vlaneseq
  %v2308 = vshrl.u32 %v2307, 7
  %v2309 = vsub.s32 %v2306, %v2308
  %v2310 = vrot.slane %v2296, %v2309
  %v2311 = vcombine.low %v2303, %v2310
  %v2313 = vunpack.c.l.s4 1966171168
  %v2314 = vunpack.c.0.s8 %v2313
  %v2315 = vlaneseq
  %v2316 = vshrl.u32 %v2315, 7
  %v2317 = vsub.s32 %v2314, %v2316
  %v2318 = vrot.slane %v2311, %v2317
  %s2320 = scalar_lea.vmem %s3, 2
  %2321 = vst.msk [vmem:[%s2320] ss:$8 sm:$0xf] %vm2120, %v2318
  %2322 = vst.msk [vmem:[%s2320] ss:$8 sm:$0x0] %vm2120, %v2318
  %v2323 = vmul.f32 %v1998, %v1948
  %v2324 = vmul.f32 %v1998, %v1949
  %v2325 = vmul.f32 %v1998, %v1950
  %v2326 = vmul.f32 %v1998, %v1951
  %v2327 = vmul.f32 %v2002, %v1952
  %v2328 = vmul.f32 %v2002, %v1953
  %v2329 = vmul.f32 %v2002, %v1954
  %v2330 = vmul.f32 %v2002, %v1955
  %v2331 = vmul.f32 %v2006, %v1956
  %v2332 = vmul.f32 %v2006, %v1957
  %v2333 = vmul.f32 %v2006, %v1958
  %v2334 = vmul.f32 %v2006, %v1959
  %v2335 = vmul.f32 %v2010, %v1960
  %v2336 = vmul.f32 %v2010, %v1961
  %v2337 = vmul.f32 %v2010, %v1962
  %v2338 = vmul.f32 %v2010, %v1963
  %v2339 = vmul.f32 %v2014, %v1964
  %v2340 = vmul.f32 %v2014, %v1965
  %v2341 = vmul.f32 %v2014, %v1966
  %v2342 = vmul.f32 %v2014, %v1967
  %v2343 = vmul.f32 %v2018, %v1968
  %v2344 = vmul.f32 %v2018, %v1969
  %v2345 = vmul.f32 %v2018, %v1970
  %v2346 = vmul.f32 %v2018, %v1971
  %v2347 = vadd.f32 %v2323, %v2327
  %v2348 = vadd.f32 %v2347, %v2331
  %v2349 = vadd.f32 %v2348, %v2335
  %v2350 = vadd.f32 %v2349, %v2339
  %v2351 = vadd.f32 %v2350, %v2343
  %v2352 = vrot.slane %v2351, 4
  %v2353 = vadd.f32 %v2351, %v2352
  %v2354 = vrot.slane %v2353, 2
  %v2355 = vadd.f32 %v2353, %v2354
  %v2356 = vrot.slane %v2355, 1
  %v2357 = vadd.f32 %v2355, %v2356
  %v2358 = vadd.f32 %v2324, %v2328
  %v2359 = vadd.f32 %v2358, %v2332
  %v2360 = vadd.f32 %v2359, %v2336
  %v2361 = vadd.f32 %v2360, %v2340
  %v2362 = vadd.f32 %v2361, %v2344
  %v2363 = vrot.slane %v2362, 4
  %v2364 = vadd.f32 %v2362, %v2363
  %v2365 = vrot.slane %v2364, 2
  %v2366 = vadd.f32 %v2364, %v2365
  %v2367 = vrot.slane %v2366, 1
  %v2368 = vadd.f32 %v2366, %v2367
  %v2369 = vadd.f32 %v2325, %v2329
  %v2370 = vadd.f32 %v2369, %v2333
  %v2371 = vadd.f32 %v2370, %v2337
  %v2372 = vadd.f32 %v2371, %v2341
  %v2373 = vadd.f32 %v2372, %v2345
  %v2374 = vrot.slane %v2373, 4
  %v2375 = vadd.f32 %v2373, %v2374
  %v2376 = vrot.slane %v2375, 2
  %v2377 = vadd.f32 %v2375, %v2376
  %v2378 = vrot.slane %v2377, 1
  %v2379 = vadd.f32 %v2377, %v2378
  %v2380 = vadd.f32 %v2326, %v2330
  %v2381 = vadd.f32 %v2380, %v2334
  %v2382 = vadd.f32 %v2381, %v2338
  %v2383 = vadd.f32 %v2382, %v2342
  %v2384 = vadd.f32 %v2383, %v2346
  %v2385 = vrot.slane %v2384, 4
  %v2386 = vadd.f32 %v2384, %v2385
  %v2387 = vrot.slane %v2386, 2
  %v2388 = vadd.f32 %v2386, %v2387
  %v2389 = vrot.slane %v2388, 1
  %v2390 = vadd.f32 %v2388, %v2389
  %v2395 = vcombine.low %v2357, %v2368
  %v2396 = vcombine.low %v2379, %v2390
  %v2398 = vunpack.c.l.s4 1966171168
  %v2399 = vunpack.c.0.s8 %v2398
  %v2400 = vlaneseq
  %v2401 = vshrl.u32 %v2400, 7
  %v2402 = vsub.s32 %v2399, %v2401
  %v2403 = vrot.slane %v2395, %v2402
  %v2405 = vunpack.c.l.s4 1966171168
  %v2406 = vunpack.c.0.s8 %v2405
  %v2407 = vlaneseq
  %v2408 = vshrl.u32 %v2407, 7
  %v2409 = vsub.s32 %v2406, %v2408
  %v2410 = vrot.slane %v2396, %v2409
  %v2411 = vcombine.low %v2403, %v2410
  %v2413 = vunpack.c.l.s4 1966171168
  %v2414 = vunpack.c.0.s8 %v2413
  %v2415 = vlaneseq
  %v2416 = vshrl.u32 %v2415, 7
  %v2417 = vsub.s32 %v2414, %v2416
  %v2418 = vrot.slane %v2411, %v2417
  %s2420 = scalar_lea.vmem %s3, 3
  %2421 = vst.msk [vmem:[%s2420] ss:$8 sm:$0xf] %vm2120, %v2418
  %2422 = vst.msk [vmem:[%s2420] ss:$8 sm:$0x0] %vm2120, %v2418
  %v2423 = vmul.f32 %v1998, %v1972
  %v2424 = vmul.f32 %v1998, %v1973
  %v2425 = vmul.f32 %v1998, %v1974
  %v2426 = vmul.f32 %v1998, %v1975
  %v2427 = vmul.f32 %v2002, %v1976
  %v2428 = vmul.f32 %v2002, %v1977
  %v2429 = vmul.f32 %v2002, %v1978
  %v2430 = vmul.f32 %v2002, %v1979
  %v2431 = vmul.f32 %v2006, %v1980
  %v2432 = vmul.f32 %v2006, %v1981
  %v2433 = vmul.f32 %v2006, %v1982
  %v2434 = vmul.f32 %v2006, %v1983
  %v2435 = vmul.f32 %v2010, %v1984
  %v2436 = vmul.f32 %v2010, %v1985
  %v2437 = vmul.f32 %v2010, %v1986
  %v2438 = vmul.f32 %v2010, %v1987
  %v2439 = vmul.f32 %v2014, %v1988
  %v2440 = vmul.f32 %v2014, %v1989
  %v2441 = vmul.f32 %v2014, %v1990
  %v2442 = vmul.f32 %v2014, %v1991
  %v2443 = vmul.f32 %v2018, %v1992
  %v2444 = vmul.f32 %v2018, %v1993
  %v2445 = vmul.f32 %v2018, %v1994
  %v2446 = vmul.f32 %v2018, %v1995
  %v2447 = vadd.f32 %v2423, %v2427
  %v2448 = vadd.f32 %v2447, %v2431
  %v2449 = vadd.f32 %v2448, %v2435
  %v2450 = vadd.f32 %v2449, %v2439
  %v2451 = vadd.f32 %v2450, %v2443
  %v2452 = vrot.slane %v2451, 4
  %v2453 = vadd.f32 %v2451, %v2452
  %v2454 = vrot.slane %v2453, 2
  %v2455 = vadd.f32 %v2453, %v2454
  %v2456 = vrot.slane %v2455, 1
  %v2457 = vadd.f32 %v2455, %v2456
  %v2458 = vadd.f32 %v2424, %v2428
  %v2459 = vadd.f32 %v2458, %v2432
  %v2460 = vadd.f32 %v2459, %v2436
  %v2461 = vadd.f32 %v2460, %v2440
  %v2462 = vadd.f32 %v2461, %v2444
  %v2463 = vrot.slane %v2462, 4
  %v2464 = vadd.f32 %v2462, %v2463
  %v2465 = vrot.slane %v2464, 2
  %v2466 = vadd.f32 %v2464, %v2465
  %v2467 = vrot.slane %v2466, 1
  %v2468 = vadd.f32 %v2466, %v2467
  %v2469 = vadd.f32 %v2425, %v2429
  %v2470 = vadd.f32 %v2469, %v2433
  %v2471 = vadd.f32 %v2470, %v2437
  %v2472 = vadd.f32 %v2471, %v2441
  %v2473 = vadd.f32 %v2472, %v2445
  %v2474 = vrot.slane %v2473, 4
  %v2475 = vadd.f32 %v2473, %v2474
  %v2476 = vrot.slane %v2475, 2
  %v2477 = vadd.f32 %v2475, %v2476
  %v2478 = vrot.slane %v2477, 1
  %v2479 = vadd.f32 %v2477, %v2478
  %v2480 = vadd.f32 %v2426, %v2430
  %v2481 = vadd.f32 %v2480, %v2434
  %v2482 = vadd.f32 %v2481, %v2438
  %v2483 = vadd.f32 %v2482, %v2442
  %v2484 = vadd.f32 %v2483, %v2446
  %v2485 = vrot.slane %v2484, 4
  %v2486 = vadd.f32 %v2484, %v2485
  %v2487 = vrot.slane %v2486, 2
  %v2488 = vadd.f32 %v2486, %v2487
  %v2489 = vrot.slane %v2488, 1
  %v2490 = vadd.f32 %v2488, %v2489
  %v2495 = vcombine.low %v2457, %v2468
  %v2496 = vcombine.low %v2479, %v2490
  %v2498 = vunpack.c.l.s4 1966171168
  %v2499 = vunpack.c.0.s8 %v2498
  %v2500 = vlaneseq
  %v2501 = vshrl.u32 %v2500, 7
  %v2502 = vsub.s32 %v2499, %v2501
  %v2503 = vrot.slane %v2495, %v2502
  %v2505 = vunpack.c.l.s4 1966171168
  %v2506 = vunpack.c.0.s8 %v2505
  %v2507 = vlaneseq
  %v2508 = vshrl.u32 %v2507, 7
  %v2509 = vsub.s32 %v2506, %v2508
  %v2510 = vrot.slane %v2496, %v2509
  %v2511 = vcombine.low %v2503, %v2510
  %v2513 = vunpack.c.l.s4 1966171168
  %v2514 = vunpack.c.0.s8 %v2513
  %v2515 = vlaneseq
  %v2516 = vshrl.u32 %v2515, 7
  %v2517 = vsub.s32 %v2514, %v2516
  %v2518 = vrot.slane %v2511, %v2517
  %s2520 = scalar_lea.vmem %s3, 4
  %2521 = vst.msk [vmem:[%s2520] ss:$8 sm:$0xf] %vm2120, %v2518
  %2522 = vst.msk [vmem:[%s2520] ss:$8 sm:$0x0] %vm2120, %v2518
  // Predicated region
  $region14: #{sine_model_forward.1} parent=0 // pred_check
    _
  $region15: #{sine_model_forward.1} parent=0 // pred_check_branch
    %2524 = sbr.rel (0) target = $region17
  $region16: #{sine_model_forward.1} parent=0 // pred_region
    _
  $region17: #{sine_model_forward.1} parent=0 // pred_fallthru
    _
  // Predicated region
  $region18: #{sine_model_forward.1} parent=0 // pred_check
    _
  $region19: #{sine_model_forward.1} parent=0 // pred_check_branch
    %2526 = sbr.rel (0) target = $region21
  $region20: #{sine_model_forward.1} parent=0 // pred_region
    _
  $region21: #{sine_model_forward.1} parent=0 // pred_fallthru
    _

</llo_original>
